<compile_context>
chip_gen: v7x
topology: tpu7x:2x2x1
jax: 0.10.0
libtpu: 0.0.40
codegen_flags: <defaults>
</compile_context>

<pallas_src>
import functools
import math

import jax
import jax.numpy as jnp
from jax.experimental import pallas as pl
from jax.experimental.pallas import tpu as pltpu

BN_EPS = 1e-5
_BN_SCALE = 1.0 / math.sqrt(1.0 + BN_EPS)  # fresh BatchNorm: y = x / sqrt(1 + eps)


# ----------------------------------------------------------------------------
# Fully fused decoder kernel (one grid step == one batch element)
# ----------------------------------------------------------------------------
def _decoder_kernel(x_ref, masks_ref, *refs, H, W, node_plan, concat_ids):
    *w_refs, o_ref = refs
    HW = H * W

    # Hoist the 3x3-conv edge masks once (JAX does not CSE loads/broadcasts).
    masks = [masks_ref[k] for k in range(9)]           # each (1, HW) f32 of 0/1

    def conv3x3(x, w_ref, *, pre_relu, post_relu=False):
        # x: (Cin, HW) f32 channel-major.  w_ref: (Cout, 9*Cin) bf16, BN folded.
        if pre_relu:
            x = jnp.maximum(x, 0.0)                    # relu(0)=0, safe with masks
        taps = []
        for dy in range(3):
            for dx in range(3):
                if dy == 1 and dx == 1:
                    taps.append(x)                     # centre tap, always valid
                    continue
                sh = (dy - 1) * W + (dx - 1)           # flat-index offset of tap
                t = pltpu.roll(x, shift=(-sh) % HW, axis=1)
                taps.append(t * masks[dy * 3 + dx])    # zero wrapped / edge lanes
        stacked = jnp.concatenate(taps, axis=0).astype(jnp.bfloat16)  # (9*Cin, HW)
        y = jnp.dot(w_ref[...], stacked, preferred_element_type=jnp.float32)
        if post_relu:
            y = jnp.maximum(y, 0.0)
        return y                                       # (Cout, HW) f32

    def conv1x1(x, w_ref, *, pre_relu):
        if pre_relu:
            x = jnp.maximum(x, 0.0)
        return jnp.dot(w_ref[...], x.astype(jnp.bfloat16),
                       preferred_element_type=jnp.float32)

    xin = x_ref[0]                                     # (Cin_pad, HW) f32

    wi = 0
    # stem0: conv3x3 -> BN -> ReLU -> conv3x3 -> BN   (BN folded into weights)
    h = conv3x3(xin, w_refs[wi], pre_relu=False, post_relu=True); wi += 1
    s0 = conv3x3(h, w_refs[wi], pre_relu=False); wi += 1
    # stem1: ReLU -> conv3x3 -> BN
    s1 = conv3x3(s0, w_refs[wi], pre_relu=True); wi += 1

    states = [s0, s1]
    for (x_id, x_op, y_id, y_op) in node_plan:
        branch_outs = []
        for sid, op in ((x_id, x_op), (y_id, y_op)):
            if op == 0:      # WSReLUConvBN 3x3 (weight selected by input id)
                branch_outs.append(conv3x3(states[sid], w_refs[wi], pre_relu=True))
                wi += 1
            elif op == 1:    # WSReLUConvBN 1x1
                branch_outs.append(conv1x1(states[sid], w_refs[wi], pre_relu=True))
                wi += 1
            elif op == 2:    # Identity
                branch_outs.append(states[sid])
            else:
                raise ValueError(f"unknown op index {op}")
        states.append(branch_outs[0] + branch_outs[1])

    # final_combine_conv: ReLU -> 1x1 conv over channel-concat of unused states -> BN
    cat = jnp.concatenate([states[i] for i in concat_ids], axis=0)
    out = conv1x1(cat, w_refs[wi], pre_relu=True)

    o_ref[0] = out.astype(o_ref.dtype)                 # (Cout, HW) lane-dense store


# ----------------------------------------------------------------------------
# Host-side helpers (weight folding / masks / padding)
# ----------------------------------------------------------------------------
def _round_up(v, m):
    return (v + m - 1) // m * m


def _conv3x3_masks(H, W):
    """Per-tap validity masks for a 3x3 pad=1 conv on the flattened H*W axis."""
    yy, xx = jnp.meshgrid(jnp.arange(H), jnp.arange(W), indexing="ij")
    ms = []
    for dy in range(3):
        for dx in range(3):
            v = ((xx + dx - 1 >= 0) & (xx + dx - 1 < W) &
                 (yy + dy - 1 >= 0) & (yy + dy - 1 < H))
            ms.append(v.reshape(1, H * W))
    return jnp.stack(ms, axis=0).astype(jnp.float32)   # (9, 1, H*W)


def _fold_w3(w, cin, cout_pad):
    """(cout, 9*cin) f32 -> BN-folded, channel-padded (cout_pad, 9*cin_pad) bf16."""
    cout = w.shape[0]
    cin_pad = _round_up(cin, 8)
    w = w.reshape(cout, 9, cin)
    w = jnp.pad(w, ((0, cout_pad - cout), (0, 0), (0, cin_pad - cin)))
    return (w.reshape(cout_pad, 9 * cin_pad) * _BN_SCALE).astype(jnp.bfloat16)


def _fold_w1(w):
    return (w * _BN_SCALE).astype(jnp.bfloat16)


def _build_plan_and_weights(params, arch, c_in, c_out, nodes):
    """Parse `arch`, fold BN into weights, return (node_plan, concat_ids, weights)
    with weights in exactly the order the kernel consumes them."""
    c_half = c_out // 2
    c_half_pad = _round_up(c_half, 8)
    node_plan = tuple(tuple(int(a) for a in arch[4 * i:4 * i + 4])
                      for i in range(nodes))

    weights = [
        _fold_w3(params["stem0_w1"], c_in, c_half_pad),
        _fold_w3(params["stem0_w2"], c_half, c_out),
        _fold_w3(params["stem1_w"], c_out, c_out),
    ]
    used = [0] * (nodes + 2)
    for i, (x_id, x_op, y_id, y_op) in enumerate(node_plan):
        used[x_id] += 1
        used[y_id] += 1
        node_p = params["nodes"][i]
        for sid, op, branch in ((x_id, x_op, "x"), (y_id, y_op, "y")):
            if op == 0:
                weights.append(_fold_w3(node_p[branch + "_w3"][sid], c_out, c_out))
            elif op == 1:
                weights.append(_fold_w1(node_p[branch + "_w1"][sid]))
    concat_ids = tuple(i for i, u in enumerate(used) if u == 0)
    w_final = jnp.concatenate([params["final_w"][i] for i in concat_ids], axis=1)
    weights.append(_fold_w1(w_final))
    return node_plan, concat_ids, weights


# ----------------------------------------------------------------------------
# Parameter init (deterministic, kaiming-normal like nn.init.kaiming_normal_)
# Weights stored channel-major as (Cout, KH*KW*Cin), tap-major / cin-minor.
# ----------------------------------------------------------------------------
def _kaiming(key, cout, k_elems, fan_in):
    std = math.sqrt(2.0 / fan_in)
    return jax.random.normal(key, (cout, k_elems), jnp.float32) * std


def _kaiming_ws(key, n, cout, k_elems, fan_in):
    std = math.sqrt(2.0 / fan_in)
    return jax.random.normal(key, (n, cout, k_elems), jnp.float32) * std


def init_params(key, c_in, c_out, nodes):
    keys = jax.random.split(key, 4 + nodes)
    c_half = c_out // 2
    p = {
        "stem0_w1": _kaiming(keys[0], c_half, 9 * c_in, 9 * c_in),
        "stem0_w2": _kaiming(keys[1], c_out, 9 * c_half, 9 * c_half),
        "stem1_w":  _kaiming(keys[2], c_out, 9 * c_out, 9 * c_out),
        "final_w":  _kaiming_ws(keys[3], nodes + 2, c_out, c_out, c_out),
        "nodes": [],
    }
    for i in range(nodes):
        npi = i + 2   # num_possible_inputs for node i (weight sharing over input id)
        k0, k1, k2, k3 = jax.random.split(keys[4 + i], 4)
        p["nodes"].append({
            "x_w3": _kaiming_ws(k0, npi, c_out, 9 * c_out, 9 * c_out),
            "x_w1": _kaiming_ws(k1, npi, c_out, c_out, c_out),
            "y_w3": _kaiming_ws(k2, npi, c_out, 9 * c_out, 9 * c_out),
            "y_w1": _kaiming_ws(k3, npi, c_out, c_out, c_out),
        })
    return p


# ----------------------------------------------------------------------------
# Public forward (NCHW in, NCHW out) — single pallas_call for the whole decoder
# ----------------------------------------------------------------------------
def nao_decoder_forward(params, x_nchw, size, arch, c_out, nodes):
    del size  # unused by the reference forward as well
    assert c_out % 8 == 0, "c_out must be a multiple of 8 (sublane alignment)"
    N, c_in, H, W = x_nchw.shape
    HW = H * W
    c_in_pad = _round_up(c_in, 8)

    # Channel-major, lane-dense activations.  One zero-pad of the input channel
    # dim (sublane alignment) for the whole forward; no per-conv spatial pad.
    x = x_nchw.reshape(N, c_in, HW)
    if c_in_pad != c_in:
        x = jnp.pad(x, ((0, 0), (0, c_in_pad - c_in), (0, 0)))

    masks = _conv3x3_masks(H, W)
    node_plan, concat_ids, weights = _build_plan_and_weights(
        params, arch, c_in, c_out, nodes)

    kernel = functools.partial(_decoder_kernel, H=H, W=W,
                               node_plan=node_plan, concat_ids=concat_ids)

    in_specs = [
        pl.BlockSpec((1, c_in_pad, HW), lambda n: (n, 0, 0)),
        pl.BlockSpec((9, 1, HW), lambda n: (0, 0, 0)),
    ]
    in_specs += [pl.BlockSpec(w.shape, lambda n: (0, 0)) for w in weights]

    out = pl.pallas_call(
        kernel,
        out_shape=jax.ShapeDtypeStruct((N, c_out, HW), jnp.float32),
        grid_spec=pltpu.PrefetchScalarGridSpec(
            num_scalar_prefetch=0,
            grid=(N,),
            in_specs=in_specs,
            out_specs=pl.BlockSpec((1, c_out, HW), lambda n: (n, 0, 0)),
        ),
        compiler_params=pltpu.CompilerParams(
            dimension_semantics=("parallel",)),   # feeds both TensorCores on v7x
    )(x, masks, *weights)

    return out.reshape(N, c_out, H, W)            # NCHW, free reshape


# ----------------------------------------------------------------------------
# Pure-JAX reference (lax.conv), with matched bf16-operand / f32-accum numerics
# ----------------------------------------------------------------------------
def _ref_conv3x3(x_nchw, w_folded, cin, cout):
    cin_pad = _round_up(cin, 8)
    w = w_folded.reshape(-1, 3, 3, cin_pad)[:cout, :, :, :cin]   # (O,KH,KW,I) bf16
    return jax.lax.conv_general_dilated(
        x_nchw.astype(jnp.bfloat16), w, window_strides=(1, 1), padding="SAME",
        dimension_numbers=("NCHW", "OHWI", "NCHW"),
        preferred_element_type=jnp.float32)


def _ref_conv1x1(x_nchw, w_folded):
    return jnp.einsum("oc,nchw->nohw", w_folded, x_nchw.astype(jnp.bfloat16),
                      preferred_element_type=jnp.float32)


def nao_decoder_reference(params, x_nchw, size, arch, c_out, nodes):
    del size
    _, c_in, _, _ = x_nchw.shape
    c_half = c_out // 2
    node_plan, concat_ids, weights = _build_plan_and_weights(
        params, arch, c_in, c_out, nodes)
    relu = lambda t: jnp.maximum(t, 0.0)

    wi = 0
    h = relu(_ref_conv3x3(x_nchw, weights[wi], c_in, c_half)); wi += 1
    s0 = _ref_conv3x3(h, weights[wi], c_half, c_out); wi += 1
    s1 = _ref_conv3x3(relu(s0), weights[wi], c_out, c_out); wi += 1

    states = [s0, s1]
    for (x_id, x_op, y_id, y_op) in node_plan:
        outs = []
        for sid, op in ((x_id, x_op), (y_id, y_op)):
            if op == 0:
                outs.append(_ref_conv3x3(relu(states[sid]), weights[wi], c_out, c_out))
                wi += 1
            elif op == 1:
                outs.append(_ref_conv1x1(relu(states[sid]), weights[wi]))
                wi += 1
            else:
                outs.append(states[sid])
        states.append(outs[0] + outs[1])

    cat = jnp.concatenate([states[i] for i in concat_ids], axis=1)
    return _ref_conv1x1(relu(cat), weights[wi])


# ----------------------------------------------------------------------------
if __name__ == "__main__":
    N, C_IN, C_OUT, NODES, H, W = 2, 4, 8, 3, 16, 16

    key = jax.random.PRNGKey(0)
    kx, kp = jax.random.split(key)
    x = jax.random.normal(kx, (N, C_IN, H, W), jnp.float32)
    params = init_params(kp, C_IN, C_OUT, NODES)

    # arch: 4 ints per node: (x_id, x_op, y_id, y_op)
    arch = [0, 0, 1, 1,
            0, 2, 1, 0,
            0, 1, 1, 2]

    out = nao_decoder_forward(params, x, (H, W), arch, C_OUT, NODES)
    out = jax.block_until_ready(out)
    assert out.shape == (N, C_OUT, H, W), out.shape
    assert bool(jnp.all(jnp.isfinite(out)))

    ref = nao_decoder_reference(params, x, (H, W), arch, C_OUT, NODES)
    ref = jax.block_until_ready(ref)
    err = float(jnp.max(jnp.abs(out - ref)))
    scale = float(jnp.max(jnp.abs(ref))) + 1e-6
    assert err <= 2e-2 * scale + 2e-2, ("kernel/reference mismatch", err, scale)

    print("KERNEL_OK")
</pallas_src>

<mosaic_0001>
module attributes {stable_mosaic.version = 11 : i64} {
  func.func @_decoder_kernel(%arg0: i32, %arg1: memref<1x8x256xf32, #tpu.memory_space<vmem>>, %arg2: memref<9x1x256xf32, #tpu.memory_space<vmem>>, %arg3: memref<8x72xbf16, #tpu.memory_space<vmem>>, %arg4: memref<8x72xbf16, #tpu.memory_space<vmem>>, %arg5: memref<8x72xbf16, #tpu.memory_space<vmem>>, %arg6: memref<8x72xbf16, #tpu.memory_space<vmem>>, %arg7: memref<8x8xbf16, #tpu.memory_space<vmem>>, %arg8: memref<8x72xbf16, #tpu.memory_space<vmem>>, %arg9: memref<8x8xbf16, #tpu.memory_space<vmem>>, %arg10: memref<8x24xbf16, #tpu.memory_space<vmem>>, %arg11: memref<1x8x256xf32, #tpu.memory_space<vmem>>) attributes {dimension_semantics = [#tpu.dimension_semantics<parallel>], iteration_bounds = array<i64: 2>, scalar_prefetch = 0 : i64, scratch_operands = 0 : i64, tpu.core_type = #tpu.core_type<tc>, window_params = [{transform_indices = @transform_0, window_bounds = array<i64: 1, 8, 256>}, {pipeline_mode = #tpu.pipeline_mode<synchronous>, transform_indices = @transform_1, window_bounds = array<i64: 9, 1, 256>}, {pipeline_mode = #tpu.pipeline_mode<synchronous>, transform_indices = @transform_2, window_bounds = array<i64: 8, 72>}, {pipeline_mode = #tpu.pipeline_mode<synchronous>, transform_indices = @transform_3, window_bounds = array<i64: 8, 72>}, {pipeline_mode = #tpu.pipeline_mode<synchronous>, transform_indices = @transform_4, window_bounds = array<i64: 8, 72>}, {pipeline_mode = #tpu.pipeline_mode<synchronous>, transform_indices = @transform_5, window_bounds = array<i64: 8, 72>}, {pipeline_mode = #tpu.pipeline_mode<synchronous>, transform_indices = @transform_6, window_bounds = array<i64: 8, 8>}, {pipeline_mode = #tpu.pipeline_mode<synchronous>, transform_indices = @transform_7, window_bounds = array<i64: 8, 72>}, {pipeline_mode = #tpu.pipeline_mode<synchronous>, transform_indices = @transform_8, window_bounds = array<i64: 8, 8>}, {pipeline_mode = #tpu.pipeline_mode<synchronous>, transform_indices = @transform_9, window_bounds = array<i64: 8, 24>}, {transform_indices = @transform_10, window_bounds = array<i64: 1, 8, 256>}]} {
    %c0 = arith.constant 0 : index
    %c0_0 = arith.constant 0 : index
    %c0_1 = arith.constant 0 : index
    %0 = vector.load %arg2[%c0, %c0_0, %c0_1] : memref<9x1x256xf32, #tpu.memory_space<vmem>>, vector<1x1x256xf32>
    %1 = vector.shape_cast %0 : vector<1x1x256xf32> to vector<1x256xf32>
    %c1 = arith.constant 1 : index
    %c0_2 = arith.constant 0 : index
    %c0_3 = arith.constant 0 : index
    %2 = vector.load %arg2[%c1, %c0_2, %c0_3] : memref<9x1x256xf32, #tpu.memory_space<vmem>>, vector<1x1x256xf32>
    %3 = vector.shape_cast %2 : vector<1x1x256xf32> to vector<1x256xf32>
    %c2 = arith.constant 2 : index
    %c0_4 = arith.constant 0 : index
    %c0_5 = arith.constant 0 : index
    %4 = vector.load %arg2[%c2, %c0_4, %c0_5] : memref<9x1x256xf32, #tpu.memory_space<vmem>>, vector<1x1x256xf32>
    %5 = vector.shape_cast %4 : vector<1x1x256xf32> to vector<1x256xf32>
    %c3 = arith.constant 3 : index
    %c0_6 = arith.constant 0 : index
    %c0_7 = arith.constant 0 : index
    %6 = vector.load %arg2[%c3, %c0_6, %c0_7] : memref<9x1x256xf32, #tpu.memory_space<vmem>>, vector<1x1x256xf32>
    %7 = vector.shape_cast %6 : vector<1x1x256xf32> to vector<1x256xf32>
    %c5 = arith.constant 5 : index
    %c0_8 = arith.constant 0 : index
    %c0_9 = arith.constant 0 : index
    %8 = vector.load %arg2[%c5, %c0_8, %c0_9] : memref<9x1x256xf32, #tpu.memory_space<vmem>>, vector<1x1x256xf32>
    %9 = vector.shape_cast %8 : vector<1x1x256xf32> to vector<1x256xf32>
    %c6 = arith.constant 6 : index
    %c0_10 = arith.constant 0 : index
    %c0_11 = arith.constant 0 : index
    %10 = vector.load %arg2[%c6, %c0_10, %c0_11] : memref<9x1x256xf32, #tpu.memory_space<vmem>>, vector<1x1x256xf32>
    %11 = vector.shape_cast %10 : vector<1x1x256xf32> to vector<1x256xf32>
    %c7 = arith.constant 7 : index
    %c0_12 = arith.constant 0 : index
    %c0_13 = arith.constant 0 : index
    %12 = vector.load %arg2[%c7, %c0_12, %c0_13] : memref<9x1x256xf32, #tpu.memory_space<vmem>>, vector<1x1x256xf32>
    %13 = vector.shape_cast %12 : vector<1x1x256xf32> to vector<1x256xf32>
    %c8 = arith.constant 8 : index
    %c0_14 = arith.constant 0 : index
    %c0_15 = arith.constant 0 : index
    %14 = vector.load %arg2[%c8, %c0_14, %c0_15] : memref<9x1x256xf32, #tpu.memory_space<vmem>>, vector<1x1x256xf32>
    %15 = vector.shape_cast %14 : vector<1x1x256xf32> to vector<1x256xf32>
    %c0_16 = arith.constant 0 : index
    %c0_17 = arith.constant 0 : index
    %c0_18 = arith.constant 0 : index
    %16 = vector.load %arg1[%c0_16, %c0_17, %c0_18] : memref<1x8x256xf32, #tpu.memory_space<vmem>>, vector<1x8x256xf32>
    %17 = vector.shape_cast %16 : vector<1x8x256xf32> to vector<8x256xf32>
    %c17_i32 = arith.constant 17 : i32
    %18 = tpu.dynamic_rotate %17 by %c17_i32 dim 1 : vector<8x256xf32>, i32 -> vector<8x256xf32>
    %19 = vector.broadcast %1 : vector<1x256xf32> to vector<8x256xf32>
    %20 = arith.mulf %18, %19 : vector<8x256xf32>
    %c16_i32 = arith.constant 16 : i32
    %21 = tpu.dynamic_rotate %17 by %c16_i32 dim 1 : vector<8x256xf32>, i32 -> vector<8x256xf32>
    %22 = vector.broadcast %3 : vector<1x256xf32> to vector<8x256xf32>
    %23 = arith.mulf %21, %22 : vector<8x256xf32>
    %c15_i32 = arith.constant 15 : i32
    %24 = tpu.dynamic_rotate %17 by %c15_i32 dim 1 : vector<8x256xf32>, i32 -> vector<8x256xf32>
    %25 = vector.broadcast %5 : vector<1x256xf32> to vector<8x256xf32>
    %26 = arith.mulf %24, %25 : vector<8x256xf32>
    %c1_i32 = arith.constant 1 : i32
    %27 = tpu.dynamic_rotate %17 by %c1_i32 dim 1 : vector<8x256xf32>, i32 -> vector<8x256xf32>
    %28 = vector.broadcast %7 : vector<1x256xf32> to vector<8x256xf32>
    %29 = arith.mulf %27, %28 : vector<8x256xf32>
    %c255_i32 = arith.constant 255 : i32
    %30 = tpu.dynamic_rotate %17 by %c255_i32 dim 1 : vector<8x256xf32>, i32 -> vector<8x256xf32>
    %31 = vector.broadcast %9 : vector<1x256xf32> to vector<8x256xf32>
    %32 = arith.mulf %30, %31 : vector<8x256xf32>
    %c241_i32 = arith.constant 241 : i32
    %33 = tpu.dynamic_rotate %17 by %c241_i32 dim 1 : vector<8x256xf32>, i32 -> vector<8x256xf32>
    %34 = vector.broadcast %11 : vector<1x256xf32> to vector<8x256xf32>
    %35 = arith.mulf %33, %34 : vector<8x256xf32>
    %c240_i32 = arith.constant 240 : i32
    %36 = tpu.dynamic_rotate %17 by %c240_i32 dim 1 : vector<8x256xf32>, i32 -> vector<8x256xf32>
    %37 = vector.broadcast %13 : vector<1x256xf32> to vector<8x256xf32>
    %38 = arith.mulf %36, %37 : vector<8x256xf32>
    %c239_i32 = arith.constant 239 : i32
    %39 = tpu.dynamic_rotate %17 by %c239_i32 dim 1 : vector<8x256xf32>, i32 -> vector<8x256xf32>
    %40 = vector.broadcast %15 : vector<1x256xf32> to vector<8x256xf32>
    %41 = arith.mulf %39, %40 : vector<8x256xf32>
    %42 = tpu.concatenate %20, %23, %26, %29, %17, %32, %35, %38, %41 in 0 : vector<8x256xf32>, vector<8x256xf32>, vector<8x256xf32>, vector<8x256xf32>, vector<8x256xf32>, vector<8x256xf32>, vector<8x256xf32>, vector<8x256xf32>, vector<8x256xf32> -> vector<72x256xf32>
    %43 = arith.truncf %42 : vector<72x256xf32> to vector<72x256xbf16>
    %c0_19 = arith.constant 0 : index
    %c0_20 = arith.constant 0 : index
    %44 = vector.load %arg3[%c0_19, %c0_20] : memref<8x72xbf16, #tpu.memory_space<vmem>>, vector<8x72xbf16>
    %cst = arith.constant dense<0.000000e+00> : vector<8x256xf32>
    %45 = tpu.matmul %44, %43, %cst {dimension_numbers = #tpu.dot_dimension_numbers<[1], [0], [0], [1], [0, 0, 1, 1], [], []>} : vector<8x72xbf16>, vector<72x256xbf16>, vector<8x256xf32> -> vector<8x256xf32>
    %cst_21 = arith.constant 0.000000e+00 : f32
    %46 = vector.broadcast %cst_21 : f32 to vector<8x256xf32>
    %47 = arith.maximumf %45, %46 : vector<8x256xf32>
    %c17_i32_22 = arith.constant 17 : i32
    %48 = tpu.dynamic_rotate %47 by %c17_i32_22 dim 1 : vector<8x256xf32>, i32 -> vector<8x256xf32>
    %49 = vector.broadcast %1 : vector<1x256xf32> to vector<8x256xf32>
    %50 = arith.mulf %48, %49 : vector<8x256xf32>
    %c16_i32_23 = arith.constant 16 : i32
    %51 = tpu.dynamic_rotate %47 by %c16_i32_23 dim 1 : vector<8x256xf32>, i32 -> vector<8x256xf32>
    %52 = vector.broadcast %3 : vector<1x256xf32> to vector<8x256xf32>
    %53 = arith.mulf %51, %52 : vector<8x256xf32>
    %c15_i32_24 = arith.constant 15 : i32
    %54 = tpu.dynamic_rotate %47 by %c15_i32_24 dim 1 : vector<8x256xf32>, i32 -> vector<8x256xf32>
    %55 = vector.broadcast %5 : vector<1x256xf32> to vector<8x256xf32>
    %56 = arith.mulf %54, %55 : vector<8x256xf32>
    %c1_i32_25 = arith.constant 1 : i32
    %57 = tpu.dynamic_rotate %47 by %c1_i32_25 dim 1 : vector<8x256xf32>, i32 -> vector<8x256xf32>
    %58 = vector.broadcast %7 : vector<1x256xf32> to vector<8x256xf32>
    %59 = arith.mulf %57, %58 : vector<8x256xf32>
    %c255_i32_26 = arith.constant 255 : i32
    %60 = tpu.dynamic_rotate %47 by %c255_i32_26 dim 1 : vector<8x256xf32>, i32 -> vector<8x256xf32>
    %61 = vector.broadcast %9 : vector<1x256xf32> to vector<8x256xf32>
    %62 = arith.mulf %60, %61 : vector<8x256xf32>
    %c241_i32_27 = arith.constant 241 : i32
    %63 = tpu.dynamic_rotate %47 by %c241_i32_27 dim 1 : vector<8x256xf32>, i32 -> vector<8x256xf32>
    %64 = vector.broadcast %11 : vector<1x256xf32> to vector<8x256xf32>
    %65 = arith.mulf %63, %64 : vector<8x256xf32>
    %c240_i32_28 = arith.constant 240 : i32
    %66 = tpu.dynamic_rotate %47 by %c240_i32_28 dim 1 : vector<8x256xf32>, i32 -> vector<8x256xf32>
    %67 = vector.broadcast %13 : vector<1x256xf32> to vector<8x256xf32>
    %68 = arith.mulf %66, %67 : vector<8x256xf32>
    %c239_i32_29 = arith.constant 239 : i32
    %69 = tpu.dynamic_rotate %47 by %c239_i32_29 dim 1 : vector<8x256xf32>, i32 -> vector<8x256xf32>
    %70 = vector.broadcast %15 : vector<1x256xf32> to vector<8x256xf32>
    %71 = arith.mulf %69, %70 : vector<8x256xf32>
    %72 = tpu.concatenate %50, %53, %56, %59, %47, %62, %65, %68, %71 in 0 : vector<8x256xf32>, vector<8x256xf32>, vector<8x256xf32>, vector<8x256xf32>, vector<8x256xf32>, vector<8x256xf32>, vector<8x256xf32>, vector<8x256xf32>, vector<8x256xf32> -> vector<72x256xf32>
    %73 = arith.truncf %72 : vector<72x256xf32> to vector<72x256xbf16>
    %c0_30 = arith.constant 0 : index
    %c0_31 = arith.constant 0 : index
    %74 = vector.load %arg4[%c0_30, %c0_31] : memref<8x72xbf16, #tpu.memory_space<vmem>>, vector<8x72xbf16>
    %cst_32 = arith.constant dense<0.000000e+00> : vector<8x256xf32>
    %75 = tpu.matmul %74, %73, %cst_32 {dimension_numbers = #tpu.dot_dimension_numbers<[1], [0], [0], [1], [0, 0, 1, 1], [], []>} : vector<8x72xbf16>, vector<72x256xbf16>, vector<8x256xf32> -> vector<8x256xf32>
    %cst_33 = arith.constant 0.000000e+00 : f32
    %76 = vector.broadcast %cst_33 : f32 to vector<8x256xf32>
    %77 = arith.maximumf %75, %76 : vector<8x256xf32>
    %c17_i32_34 = arith.constant 17 : i32
    %78 = tpu.dynamic_rotate %77 by %c17_i32_34 dim 1 : vector<8x256xf32>, i32 -> vector<8x256xf32>
    %79 = vector.broadcast %1 : vector<1x256xf32> to vector<8x256xf32>
    %80 = arith.mulf %78, %79 : vector<8x256xf32>
    %c16_i32_35 = arith.constant 16 : i32
    %81 = tpu.dynamic_rotate %77 by %c16_i32_35 dim 1 : vector<8x256xf32>, i32 -> vector<8x256xf32>
    %82 = vector.broadcast %3 : vector<1x256xf32> to vector<8x256xf32>
    %83 = arith.mulf %81, %82 : vector<8x256xf32>
    %c15_i32_36 = arith.constant 15 : i32
    %84 = tpu.dynamic_rotate %77 by %c15_i32_36 dim 1 : vector<8x256xf32>, i32 -> vector<8x256xf32>
    %85 = vector.broadcast %5 : vector<1x256xf32> to vector<8x256xf32>
    %86 = arith.mulf %84, %85 : vector<8x256xf32>
    %c1_i32_37 = arith.constant 1 : i32
    %87 = tpu.dynamic_rotate %77 by %c1_i32_37 dim 1 : vector<8x256xf32>, i32 -> vector<8x256xf32>
    %88 = vector.broadcast %7 : vector<1x256xf32> to vector<8x256xf32>
    %89 = arith.mulf %87, %88 : vector<8x256xf32>
    %c255_i32_38 = arith.constant 255 : i32
    %90 = tpu.dynamic_rotate %77 by %c255_i32_38 dim 1 : vector<8x256xf32>, i32 -> vector<8x256xf32>
    %91 = vector.broadcast %9 : vector<1x256xf32> to vector<8x256xf32>
    %92 = arith.mulf %90, %91 : vector<8x256xf32>
    %c241_i32_39 = arith.constant 241 : i32
    %93 = tpu.dynamic_rotate %77 by %c241_i32_39 dim 1 : vector<8x256xf32>, i32 -> vector<8x256xf32>
    %94 = vector.broadcast %11 : vector<1x256xf32> to vector<8x256xf32>
    %95 = arith.mulf %93, %94 : vector<8x256xf32>
    %c240_i32_40 = arith.constant 240 : i32
    %96 = tpu.dynamic_rotate %77 by %c240_i32_40 dim 1 : vector<8x256xf32>, i32 -> vector<8x256xf32>
    %97 = vector.broadcast %13 : vector<1x256xf32> to vector<8x256xf32>
    %98 = arith.mulf %96, %97 : vector<8x256xf32>
    %c239_i32_41 = arith.constant 239 : i32
    %99 = tpu.dynamic_rotate %77 by %c239_i32_41 dim 1 : vector<8x256xf32>, i32 -> vector<8x256xf32>
    %100 = vector.broadcast %15 : vector<1x256xf32> to vector<8x256xf32>
    %101 = arith.mulf %99, %100 : vector<8x256xf32>
    %102 = tpu.concatenate %80, %83, %86, %89, %77, %92, %95, %98, %101 in 0 : vector<8x256xf32>, vector<8x256xf32>, vector<8x256xf32>, vector<8x256xf32>, vector<8x256xf32>, vector<8x256xf32>, vector<8x256xf32>, vector<8x256xf32>, vector<8x256xf32> -> vector<72x256xf32>
    %103 = arith.truncf %102 : vector<72x256xf32> to vector<72x256xbf16>
    %c0_42 = arith.constant 0 : index
    %c0_43 = arith.constant 0 : index
    %104 = vector.load %arg5[%c0_42, %c0_43] : memref<8x72xbf16, #tpu.memory_space<vmem>>, vector<8x72xbf16>
    %cst_44 = arith.constant dense<0.000000e+00> : vector<8x256xf32>
    %105 = tpu.matmul %104, %103, %cst_44 {dimension_numbers = #tpu.dot_dimension_numbers<[1], [0], [0], [1], [0, 0, 1, 1], [], []>} : vector<8x72xbf16>, vector<72x256xbf16>, vector<8x256xf32> -> vector<8x256xf32>
    %cst_45 = arith.constant 0.000000e+00 : f32
    %106 = vector.broadcast %cst_45 : f32 to vector<8x256xf32>
    %107 = arith.maximumf %75, %106 : vector<8x256xf32>
    %c17_i32_46 = arith.constant 17 : i32
    %108 = tpu.dynamic_rotate %107 by %c17_i32_46 dim 1 : vector<8x256xf32>, i32 -> vector<8x256xf32>
    %109 = vector.broadcast %1 : vector<1x256xf32> to vector<8x256xf32>
    %110 = arith.mulf %108, %109 : vector<8x256xf32>
    %c16_i32_47 = arith.constant 16 : i32
    %111 = tpu.dynamic_rotate %107 by %c16_i32_47 dim 1 : vector<8x256xf32>, i32 -> vector<8x256xf32>
    %112 = vector.broadcast %3 : vector<1x256xf32> to vector<8x256xf32>
    %113 = arith.mulf %111, %112 : vector<8x256xf32>
    %c15_i32_48 = arith.constant 15 : i32
    %114 = tpu.dynamic_rotate %107 by %c15_i32_48 dim 1 : vector<8x256xf32>, i32 -> vector<8x256xf32>
    %115 = vector.broadcast %5 : vector<1x256xf32> to vector<8x256xf32>
    %116 = arith.mulf %114, %115 : vector<8x256xf32>
    %c1_i32_49 = arith.constant 1 : i32
    %117 = tpu.dynamic_rotate %107 by %c1_i32_49 dim 1 : vector<8x256xf32>, i32 -> vector<8x256xf32>
    %118 = vector.broadcast %7 : vector<1x256xf32> to vector<8x256xf32>
    %119 = arith.mulf %117, %118 : vector<8x256xf32>
    %c255_i32_50 = arith.constant 255 : i32
    %120 = tpu.dynamic_rotate %107 by %c255_i32_50 dim 1 : vector<8x256xf32>, i32 -> vector<8x256xf32>
    %121 = vector.broadcast %9 : vector<1x256xf32> to vector<8x256xf32>
    %122 = arith.mulf %120, %121 : vector<8x256xf32>
    %c241_i32_51 = arith.constant 241 : i32
    %123 = tpu.dynamic_rotate %107 by %c241_i32_51 dim 1 : vector<8x256xf32>, i32 -> vector<8x256xf32>
    %124 = vector.broadcast %11 : vector<1x256xf32> to vector<8x256xf32>
    %125 = arith.mulf %123, %124 : vector<8x256xf32>
    %c240_i32_52 = arith.constant 240 : i32
    %126 = tpu.dynamic_rotate %107 by %c240_i32_52 dim 1 : vector<8x256xf32>, i32 -> vector<8x256xf32>
    %127 = vector.broadcast %13 : vector<1x256xf32> to vector<8x256xf32>
    %128 = arith.mulf %126, %127 : vector<8x256xf32>
    %c239_i32_53 = arith.constant 239 : i32
    %129 = tpu.dynamic_rotate %107 by %c239_i32_53 dim 1 : vector<8x256xf32>, i32 -> vector<8x256xf32>
    %130 = vector.broadcast %15 : vector<1x256xf32> to vector<8x256xf32>
    %131 = arith.mulf %129, %130 : vector<8x256xf32>
    %132 = tpu.concatenate %110, %113, %116, %119, %107, %122, %125, %128, %131 in 0 : vector<8x256xf32>, vector<8x256xf32>, vector<8x256xf32>, vector<8x256xf32>, vector<8x256xf32>, vector<8x256xf32>, vector<8x256xf32>, vector<8x256xf32>, vector<8x256xf32> -> vector<72x256xf32>
    %133 = arith.truncf %132 : vector<72x256xf32> to vector<72x256xbf16>
    %c0_54 = arith.constant 0 : index
    %c0_55 = arith.constant 0 : index
    %134 = vector.load %arg6[%c0_54, %c0_55] : memref<8x72xbf16, #tpu.memory_space<vmem>>, vector<8x72xbf16>
    %cst_56 = arith.constant dense<0.000000e+00> : vector<8x256xf32>
    %135 = tpu.matmul %134, %133, %cst_56 {dimension_numbers = #tpu.dot_dimension_numbers<[1], [0], [0], [1], [0, 0, 1, 1], [], []>} : vector<8x72xbf16>, vector<72x256xbf16>, vector<8x256xf32> -> vector<8x256xf32>
    %cst_57 = arith.constant 0.000000e+00 : f32
    %136 = vector.broadcast %cst_57 : f32 to vector<8x256xf32>
    %137 = arith.maximumf %105, %136 : vector<8x256xf32>
    %c0_58 = arith.constant 0 : index
    %c0_59 = arith.constant 0 : index
    %138 = vector.load %arg7[%c0_58, %c0_59] : memref<8x8xbf16, #tpu.memory_space<vmem>>, vector<8x8xbf16>
    %139 = arith.truncf %137 : vector<8x256xf32> to vector<8x256xbf16>
    %cst_60 = arith.constant dense<0.000000e+00> : vector<8x256xf32>
    %140 = tpu.matmul %138, %139, %cst_60 {dimension_numbers = #tpu.dot_dimension_numbers<[1], [0], [0], [1], [0, 0, 1, 1], [], []>} : vector<8x8xbf16>, vector<8x256xbf16>, vector<8x256xf32> -> vector<8x256xf32>
    %141 = arith.addf %135, %140 : vector<8x256xf32>
    %cst_61 = arith.constant 0.000000e+00 : f32
    %142 = vector.broadcast %cst_61 : f32 to vector<8x256xf32>
    %143 = arith.maximumf %105, %142 : vector<8x256xf32>
    %c17_i32_62 = arith.constant 17 : i32
    %144 = tpu.dynamic_rotate %143 by %c17_i32_62 dim 1 : vector<8x256xf32>, i32 -> vector<8x256xf32>
    %145 = vector.broadcast %1 : vector<1x256xf32> to vector<8x256xf32>
    %146 = arith.mulf %144, %145 : vector<8x256xf32>
    %c16_i32_63 = arith.constant 16 : i32
    %147 = tpu.dynamic_rotate %143 by %c16_i32_63 dim 1 : vector<8x256xf32>, i32 -> vector<8x256xf32>
    %148 = vector.broadcast %3 : vector<1x256xf32> to vector<8x256xf32>
    %149 = arith.mulf %147, %148 : vector<8x256xf32>
    %c15_i32_64 = arith.constant 15 : i32
    %150 = tpu.dynamic_rotate %143 by %c15_i32_64 dim 1 : vector<8x256xf32>, i32 -> vector<8x256xf32>
    %151 = vector.broadcast %5 : vector<1x256xf32> to vector<8x256xf32>
    %152 = arith.mulf %150, %151 : vector<8x256xf32>
    %c1_i32_65 = arith.constant 1 : i32
    %153 = tpu.dynamic_rotate %143 by %c1_i32_65 dim 1 : vector<8x256xf32>, i32 -> vector<8x256xf32>
    %154 = vector.broadcast %7 : vector<1x256xf32> to vector<8x256xf32>
    %155 = arith.mulf %153, %154 : vector<8x256xf32>
    %c255_i32_66 = arith.constant 255 : i32
    %156 = tpu.dynamic_rotate %143 by %c255_i32_66 dim 1 : vector<8x256xf32>, i32 -> vector<8x256xf32>
    %157 = vector.broadcast %9 : vector<1x256xf32> to vector<8x256xf32>
    %158 = arith.mulf %156, %157 : vector<8x256xf32>
    %c241_i32_67 = arith.constant 241 : i32
    %159 = tpu.dynamic_rotate %143 by %c241_i32_67 dim 1 : vector<8x256xf32>, i32 -> vector<8x256xf32>
    %160 = vector.broadcast %11 : vector<1x256xf32> to vector<8x256xf32>
    %161 = arith.mulf %159, %160 : vector<8x256xf32>
    %c240_i32_68 = arith.constant 240 : i32
    %162 = tpu.dynamic_rotate %143 by %c240_i32_68 dim 1 : vector<8x256xf32>, i32 -> vector<8x256xf32>
    %163 = vector.broadcast %13 : vector<1x256xf32> to vector<8x256xf32>
    %164 = arith.mulf %162, %163 : vector<8x256xf32>
    %c239_i32_69 = arith.constant 239 : i32
    %165 = tpu.dynamic_rotate %143 by %c239_i32_69 dim 1 : vector<8x256xf32>, i32 -> vector<8x256xf32>
    %166 = vector.broadcast %15 : vector<1x256xf32> to vector<8x256xf32>
    %167 = arith.mulf %165, %166 : vector<8x256xf32>
    %168 = tpu.concatenate %146, %149, %152, %155, %143, %158, %161, %164, %167 in 0 : vector<8x256xf32>, vector<8x256xf32>, vector<8x256xf32>, vector<8x256xf32>, vector<8x256xf32>, vector<8x256xf32>, vector<8x256xf32>, vector<8x256xf32>, vector<8x256xf32> -> vector<72x256xf32>
    %169 = arith.truncf %168 : vector<72x256xf32> to vector<72x256xbf16>
    %c0_70 = arith.constant 0 : index
    %c0_71 = arith.constant 0 : index
    %170 = vector.load %arg8[%c0_70, %c0_71] : memref<8x72xbf16, #tpu.memory_space<vmem>>, vector<8x72xbf16>
    %cst_72 = arith.constant dense<0.000000e+00> : vector<8x256xf32>
    %171 = tpu.matmul %170, %169, %cst_72 {dimension_numbers = #tpu.dot_dimension_numbers<[1], [0], [0], [1], [0, 0, 1, 1], [], []>} : vector<8x72xbf16>, vector<72x256xbf16>, vector<8x256xf32> -> vector<8x256xf32>
    %172 = arith.addf %75, %171 : vector<8x256xf32>
    %cst_73 = arith.constant 0.000000e+00 : f32
    %173 = vector.broadcast %cst_73 : f32 to vector<8x256xf32>
    %174 = arith.maximumf %75, %173 : vector<8x256xf32>
    %c0_74 = arith.constant 0 : index
    %c0_75 = arith.constant 0 : index
    %175 = vector.load %arg9[%c0_74, %c0_75] : memref<8x8xbf16, #tpu.memory_space<vmem>>, vector<8x8xbf16>
    %176 = arith.truncf %174 : vector<8x256xf32> to vector<8x256xbf16>
    %cst_76 = arith.constant dense<0.000000e+00> : vector<8x256xf32>
    %177 = tpu.matmul %175, %176, %cst_76 {dimension_numbers = #tpu.dot_dimension_numbers<[1], [0], [0], [1], [0, 0, 1, 1], [], []>} : vector<8x8xbf16>, vector<8x256xbf16>, vector<8x256xf32> -> vector<8x256xf32>
    %178 = arith.addf %177, %105 : vector<8x256xf32>
    %179 = tpu.concatenate %141, %172, %178 in 0 : vector<8x256xf32>, vector<8x256xf32>, vector<8x256xf32> -> vector<24x256xf32>
    %cst_77 = arith.constant 0.000000e+00 : f32
    %180 = vector.broadcast %cst_77 : f32 to vector<24x256xf32>
    %181 = arith.maximumf %179, %180 : vector<24x256xf32>
    %c0_78 = arith.constant 0 : index
    %c0_79 = arith.constant 0 : index
    %182 = vector.load %arg10[%c0_78, %c0_79] : memref<8x24xbf16, #tpu.memory_space<vmem>>, vector<8x24xbf16>
    %183 = arith.truncf %181 : vector<24x256xf32> to vector<24x256xbf16>
    %cst_80 = arith.constant dense<0.000000e+00> : vector<8x256xf32>
    %184 = tpu.matmul %182, %183, %cst_80 {dimension_numbers = #tpu.dot_dimension_numbers<[1], [0], [0], [1], [0, 0, 1, 1], [], []>} : vector<8x24xbf16>, vector<24x256xbf16>, vector<8x256xf32> -> vector<8x256xf32>
    %c0_81 = arith.constant 0 : index
    %c0_82 = arith.constant 0 : index
    %c0_83 = arith.constant 0 : index
    %185 = vector.load %arg11[%c0_81, %c0_82, %c0_83] : memref<1x8x256xf32, #tpu.memory_space<vmem>>, vector<1x8x256xf32>
    %186 = vector.shape_cast %185 : vector<1x8x256xf32> to vector<8x256xf32>
    %187 = vector.shape_cast %184 : vector<8x256xf32> to vector<1x8x256xf32>
    tpu.vector_store %arg11[%c0_81, %c0_82, %c0_83], %187 {strides = array<i32>} : memref<1x8x256xf32, #tpu.memory_space<vmem>>, vector<1x8x256xf32>,
    return
  }
  func.func @transform_0(%arg0: i32) -> (i32, i32, i32) {
    %c0_i32 = arith.constant 0 : i32
    %c0_i32_0 = arith.constant 0 : i32
    %c0_i32_1 = arith.constant 0 : i32
    return %arg0, %c0_i32, %c0_i32_0 : i32, i32, i32
  }
  func.func @transform_1(%arg0: i32) -> (i32, i32, i32) {
    %c0_i32 = arith.constant 0 : i32
    %c0_i32_0 = arith.constant 0 : i32
    %c0_i32_1 = arith.constant 0 : i32
    %c0_i32_2 = arith.constant 0 : i32
    return %c0_i32, %c0_i32_0, %c0_i32_1 : i32, i32, i32
  }
  func.func @transform_2(%arg0: i32) -> (i32, i32) {
    %c0_i32 = arith.constant 0 : i32
    %c0_i32_0 = arith.constant 0 : i32
    %c0_i32_1 = arith.constant 0 : i32
    return %c0_i32, %c0_i32_0 : i32, i32
  }
  func.func @transform_3(%arg0: i32) -> (i32, i32) {
    %c0_i32 = arith.constant 0 : i32
    %c0_i32_0 = arith.constant 0 : i32
    %c0_i32_1 = arith.constant 0 : i32
    return %c0_i32, %c0_i32_0 : i32, i32
  }
  func.func @transform_4(%arg0: i32) -> (i32, i32) {
    %c0_i32 = arith.constant 0 : i32
    %c0_i32_0 = arith.constant 0 : i32
    %c0_i32_1 = arith.constant 0 : i32
    return %c0_i32, %c0_i32_0 : i32, i32
  }
  func.func @transform_5(%arg0: i32) -> (i32, i32) {
    %c0_i32 = arith.constant 0 : i32
    %c0_i32_0 = arith.constant 0 : i32
    %c0_i32_1 = arith.constant 0 : i32
    return %c0_i32, %c0_i32_0 : i32, i32
  }
  func.func @transform_6(%arg0: i32) -> (i32, i32) {
    %c0_i32 = arith.constant 0 : i32
    %c0_i32_0 = arith.constant 0 : i32
    %c0_i32_1 = arith.constant 0 : i32
    return %c0_i32, %c0_i32_0 : i32, i32
  }
  func.func @transform_7(%arg0: i32) -> (i32, i32) {
    %c0_i32 = arith.constant 0 : i32
    %c0_i32_0 = arith.constant 0 : i32
    %c0_i32_1 = arith.constant 0 : i32
    return %c0_i32, %c0_i32_0 : i32, i32
  }
  func.func @transform_8(%arg0: i32) -> (i32, i32) {
    %c0_i32 = arith.constant 0 : i32
    %c0_i32_0 = arith.constant 0 : i32
    %c0_i32_1 = arith.constant 0 : i32
    return %c0_i32, %c0_i32_0 : i32, i32
  }
  func.func @transform_9(%arg0: i32) -> (i32, i32) {
    %c0_i32 = arith.constant 0 : i32
    %c0_i32_0 = arith.constant 0 : i32
    %c0_i32_1 = arith.constant 0 : i32
    return %c0_i32, %c0_i32_0 : i32, i32
  }
  func.func @transform_10(%arg0: i32) -> (i32, i32, i32) {
    %c0_i32 = arith.constant 0 : i32
    %c0_i32_0 = arith.constant 0 : i32
    %c0_i32_1 = arith.constant 0 : i32
    return %arg0, %c0_i32, %c0_i32_0 : i32, i32, i32
  }
}

</mosaic_0001>

<llo_original>
// kernel: tpu_custom_call.1
$region0: #{tpu_custom_call.1}
  #allocation0 [shape = 'u32[]', space=smem, size = 0x4, offset = 0x4, fixed_abs, tag = 'smem constant byte address 0x4 - core index']
  #allocation1 [shape = 'u32[144,128]{1,0:T(1,128)}', space=vmem, size = 0x12000, scoped, tag = 'internal scratch']
  %s0 = inlined_call_operand.hbm [shape: f32[2,8,256], index: 0, kind: input, shape index: {}]
  %s1 = inlined_call_operand.hbm [shape: f32[9,1,256], index: 1, kind: input, shape index: {}]
  %s2 = inlined_call_operand.vmem [shape: bf16[8,72], index: 2, kind: input, shape index: {}]
  %s3 = inlined_call_operand.vmem [shape: bf16[8,72], index: 3, kind: input, shape index: {}]
  %s4 = inlined_call_operand.vmem [shape: bf16[8,72], index: 4, kind: input, shape index: {}]
  %s5 = inlined_call_operand.vmem [shape: bf16[8,72], index: 5, kind: input, shape index: {}]
  %s6 = inlined_call_operand.vmem [shape: bf16[8,8], index: 6, kind: input, shape index: {}]
  %s7 = inlined_call_operand.vmem [shape: bf16[8,72], index: 7, kind: input, shape index: {}]
  %s8 = inlined_call_operand.vmem [shape: bf16[8,8], index: 8, kind: input, shape index: {}]
  %s9 = inlined_call_operand.vmem [shape: bf16[8,24], index: 9, kind: input, shape index: {}]
  %s10 = inlined_call_operand.hbm [shape: f32[2,8,256], index: 10, kind: output, shape index: {}]
  %s11 = sld [smem:[#allocation0]]
  $region81: #{tpu_custom_call.1} parent=0
    _
  %s13 = ssub.s32 1, %s11
  %s14 = scalar_select 0, %s13, %s11
  $region1: #{tpu_custom_call.1} parent=0
    #allocation2 [shape = 'u8[16384]{0}', space=vmem, size = 0x4000, scoped, tag = 'input window, operand 0']
    #allocation3 [shape = 's32[2]{0}', space=sflag, size = 0x8, scoped, tag = 'scoped memory for tpu_custom_call.1']
    #allocation4 [shape = 's32[2]{0}', space=sflag, size = 0x8, scoped, tag = 'scoped memory for tpu_custom_call.1']
    #allocation5 [shape = 'u8[9216]{0}', space=vmem, size = 0x2400, scoped, tag = 'input window, operand 1, single buffered']
    #allocation6 [shape = 's32[1]{0}', space=sflag, size = 0x4, scoped, tag = 'scoped memory for tpu_custom_call.1']
    #allocation7 [shape = 'u8[16384]{0}', space=vmem, size = 0x4000, scoped, tag = 'output window, operand 0']
    %15 = vsyncpa [#allocation3], 0
    %s16 = scalar_lea.sflag [#allocation3], 1
    %17 = vsyncpa %s16, 0
    %18 = vsyncpa [#allocation6], 0
    %19 = vsyncpa [#allocation4], 0
    %s20 = scalar_lea.sflag [#allocation4], 1
    %21 = vsyncpa %s20, 0
    loop: start=0, step=1, limit=4
    $region2: #{tpu_custom_call.1} parent=1 // loop_pre_header
      _
    $region3: #{tpu_custom_call.1} parent=1 // loop_header
      %s23 = sphi 0, %s27
      %p24 = scmp.ge.s32.totalorder %s23, 4
      %s33 = sphi 0, %s35
      %s36 = sphi 0, %s33
      %s37 = sphi 0, %s36
      %s53 = sphi 0, %s37
      %s57 = sphi 0, %s57
      %s59 = sphi 0, %s57
      %s60 = sphi 0, %s59
      %s74 = sphi 0, %s60
      %s78 = sphi 0, %s78
      %s80 = sphi 0, %s78
      %s81 = sphi 0, %s80
      %s95 = sphi 0, %s81
      %s99 = sphi 0, %s99
      %s101 = sphi 0, %s99
      %s102 = sphi 0, %s101
      %s116 = sphi 0, %s102
      %s120 = sphi 0, %s120
      %s122 = sphi 0, %s120
      %s123 = sphi 0, %s122
      %s137 = sphi 0, %s123
      %s141 = sphi 0, %s141
      %s143 = sphi 0, %s141
      %s144 = sphi 0, %s143
      %s158 = sphi 0, %s144
      %s162 = sphi 0, %s162
      %s164 = sphi 0, %s162
      %s165 = sphi 0, %s164
      %s179 = sphi 0, %s165
      %s183 = sphi 0, %s183
      %s185 = sphi 0, %s183
      %s186 = sphi 0, %s185
      %s200 = sphi 0, %s186
      %s204 = sphi 0, %s204
      %s206 = sphi 0, %s204
      %s207 = sphi 0, %s206
      %s221 = sphi 0, %s207
      %s225 = sphi 0, %s225
      %s227 = sphi 0, %s225
      %s228 = sphi 0, %s227
      %s242 = sphi 0, %s228
      %s248 = sphi 0, %s250
      %s251 = sphi 0, %s248
      %s252 = sphi 0, %s251
      %s268 = sphi 0, %s252
    $region4: #{tpu_custom_call.1} parent=1 // loop_header_branch
      %26 = sbr.rel (%p24) target = $region8
    $region5: #{tpu_custom_call.1} parent=1 // loop_body
      %s28 = ssub.s32 %s23, 1
      %s29 = ssub.s32 %s23, 2
      %s30 = sadd.s32 %s23, 1
      %s31 = ssub.s32 %s23, %s30
      %p32 = scmp.eq.s32.totalorder %s31, 0
      %s34 = sadd.s32 %s33, 1
      %s35 = scalar_select %p32, %s33, %s34
      %p38 = pneg %p32
      %p39 = scmp.eq.s32.totalorder %s23, 1
      %p40 = por %p38, %p39
      %p41 = scmp.ne.s32.totalorder %s33, %s36
      %p42 = scmp.eq.s32.totalorder %s23, 0
      %p43 = por %p41, %p42
      %p44 = scmp.ne.s32.totalorder %s33, %s36
      %p45 = scmp.eq.s32.totalorder %s28, 1
      %p46 = por %p44, %p45
      %p47 = scmp.ne.s32.totalorder %s36, %s37
      %p48 = scmp.eq.s32.totalorder %s28, 0
      %p49 = por %p47, %p48
      %p50 = scmp.ne.s32.totalorder %s36, %s37
      %p51 = scmp.eq.s32.totalorder %s29, 1
      %p52 = por %p50, %p51
      %p54 = scmp.ne.s32.totalorder %s37, %s53
      %p55 = scmp.eq.s32.totalorder %s29, 0
      %p56 = por %p54, %p55
      %s58 = sadd.s32 %s57, 1
      %p61 = scmp.eq.s32.totalorder %s23, 1
      %p62 = scmp.ne.s32.totalorder %s57, %s59
      %p63 = scmp.eq.s32.totalorder %s23, 0
      %p64 = por %p62, %p63
      %p65 = scmp.ne.s32.totalorder %s57, %s59
      %p66 = scmp.eq.s32.totalorder %s28, 1
      %p67 = por %p65, %p66
      %p68 = scmp.ne.s32.totalorder %s59, %s60
      %p69 = scmp.eq.s32.totalorder %s28, 0
      %p70 = por %p68, %p69
      %p71 = scmp.ne.s32.totalorder %s59, %s60
      %p72 = scmp.eq.s32.totalorder %s29, 1
      %p73 = por %p71, %p72
      %p75 = scmp.ne.s32.totalorder %s60, %s74
      %p76 = scmp.eq.s32.totalorder %s29, 0
      %p77 = por %p75, %p76
      %s79 = sadd.s32 %s78, 1
      %p82 = scmp.eq.s32.totalorder %s23, 1
      %p83 = scmp.ne.s32.totalorder %s78, %s80
      %p84 = scmp.eq.s32.totalorder %s23, 0
      %p85 = por %p83, %p84
      %p86 = scmp.ne.s32.totalorder %s78, %s80
      %p87 = scmp.eq.s32.totalorder %s28, 1
      %p88 = por %p86, %p87
      %p89 = scmp.ne.s32.totalorder %s80, %s81
      %p90 = scmp.eq.s32.totalorder %s28, 0
      %p91 = por %p89, %p90
      %p92 = scmp.ne.s32.totalorder %s80, %s81
      %p93 = scmp.eq.s32.totalorder %s29, 1
      %p94 = por %p92, %p93
      %p96 = scmp.ne.s32.totalorder %s81, %s95
      %p97 = scmp.eq.s32.totalorder %s29, 0
      %p98 = por %p96, %p97
      %s100 = sadd.s32 %s99, 1
      %p103 = scmp.eq.s32.totalorder %s23, 1
      %p104 = scmp.ne.s32.totalorder %s99, %s101
      %p105 = scmp.eq.s32.totalorder %s23, 0
      %p106 = por %p104, %p105
      %p107 = scmp.ne.s32.totalorder %s99, %s101
      %p108 = scmp.eq.s32.totalorder %s28, 1
      %p109 = por %p107, %p108
      %p110 = scmp.ne.s32.totalorder %s101, %s102
      %p111 = scmp.eq.s32.totalorder %s28, 0
      %p112 = por %p110, %p111
      %p113 = scmp.ne.s32.totalorder %s101, %s102
      %p114 = scmp.eq.s32.totalorder %s29, 1
      %p115 = por %p113, %p114
      %p117 = scmp.ne.s32.totalorder %s102, %s116
      %p118 = scmp.eq.s32.totalorder %s29, 0
      %p119 = por %p117, %p118
      %s121 = sadd.s32 %s120, 1
      %p124 = scmp.eq.s32.totalorder %s23, 1
      %p125 = scmp.ne.s32.totalorder %s120, %s122
      %p126 = scmp.eq.s32.totalorder %s23, 0
      %p127 = por %p125, %p126
      %p128 = scmp.ne.s32.totalorder %s120, %s122
      %p129 = scmp.eq.s32.totalorder %s28, 1
      %p130 = por %p128, %p129
      %p131 = scmp.ne.s32.totalorder %s122, %s123
      %p132 = scmp.eq.s32.totalorder %s28, 0
      %p133 = por %p131, %p132
      %p134 = scmp.ne.s32.totalorder %s122, %s123
      %p135 = scmp.eq.s32.totalorder %s29, 1
      %p136 = por %p134, %p135
      %p138 = scmp.ne.s32.totalorder %s123, %s137
      %p139 = scmp.eq.s32.totalorder %s29, 0
      %p140 = por %p138, %p139
      %s142 = sadd.s32 %s141, 1
      %p145 = scmp.eq.s32.totalorder %s23, 1
      %p146 = scmp.ne.s32.totalorder %s141, %s143
      %p147 = scmp.eq.s32.totalorder %s23, 0
      %p148 = por %p146, %p147
      %p149 = scmp.ne.s32.totalorder %s141, %s143
      %p150 = scmp.eq.s32.totalorder %s28, 1
      %p151 = por %p149, %p150
      %p152 = scmp.ne.s32.totalorder %s143, %s144
      %p153 = scmp.eq.s32.totalorder %s28, 0
      %p154 = por %p152, %p153
      %p155 = scmp.ne.s32.totalorder %s143, %s144
      %p156 = scmp.eq.s32.totalorder %s29, 1
      %p157 = por %p155, %p156
      %p159 = scmp.ne.s32.totalorder %s144, %s158
      %p160 = scmp.eq.s32.totalorder %s29, 0
      %p161 = por %p159, %p160
      %s163 = sadd.s32 %s162, 1
      %p166 = scmp.eq.s32.totalorder %s23, 1
      %p167 = scmp.ne.s32.totalorder %s162, %s164
      %p168 = scmp.eq.s32.totalorder %s23, 0
      %p169 = por %p167, %p168
      %p170 = scmp.ne.s32.totalorder %s162, %s164
      %p171 = scmp.eq.s32.totalorder %s28, 1
      %p172 = por %p170, %p171
      %p173 = scmp.ne.s32.totalorder %s164, %s165
      %p174 = scmp.eq.s32.totalorder %s28, 0
      %p175 = por %p173, %p174
      %p176 = scmp.ne.s32.totalorder %s164, %s165
      %p177 = scmp.eq.s32.totalorder %s29, 1
      %p178 = por %p176, %p177
      %p180 = scmp.ne.s32.totalorder %s165, %s179
      %p181 = scmp.eq.s32.totalorder %s29, 0
      %p182 = por %p180, %p181
      %s184 = sadd.s32 %s183, 1
      %p187 = scmp.eq.s32.totalorder %s23, 1
      %p188 = scmp.ne.s32.totalorder %s183, %s185
      %p189 = scmp.eq.s32.totalorder %s23, 0
      %p190 = por %p188, %p189
      %p191 = scmp.ne.s32.totalorder %s183, %s185
      %p192 = scmp.eq.s32.totalorder %s28, 1
      %p193 = por %p191, %p192
      %p194 = scmp.ne.s32.totalorder %s185, %s186
      %p195 = scmp.eq.s32.totalorder %s28, 0
      %p196 = por %p194, %p195
      %p197 = scmp.ne.s32.totalorder %s185, %s186
      %p198 = scmp.eq.s32.totalorder %s29, 1
      %p199 = por %p197, %p198
      %p201 = scmp.ne.s32.totalorder %s186, %s200
      %p202 = scmp.eq.s32.totalorder %s29, 0
      %p203 = por %p201, %p202
      %s205 = sadd.s32 %s204, 1
      %p208 = scmp.eq.s32.totalorder %s23, 1
      %p209 = scmp.ne.s32.totalorder %s204, %s206
      %p210 = scmp.eq.s32.totalorder %s23, 0
      %p211 = por %p209, %p210
      %p212 = scmp.ne.s32.totalorder %s204, %s206
      %p213 = scmp.eq.s32.totalorder %s28, 1
      %p214 = por %p212, %p213
      %p215 = scmp.ne.s32.totalorder %s206, %s207
      %p216 = scmp.eq.s32.totalorder %s28, 0
      %p217 = por %p215, %p216
      %p218 = scmp.ne.s32.totalorder %s206, %s207
      %p219 = scmp.eq.s32.totalorder %s29, 1
      %p220 = por %p218, %p219
      %p222 = scmp.ne.s32.totalorder %s207, %s221
      %p223 = scmp.eq.s32.totalorder %s29, 0
      %p224 = por %p222, %p223
      %s226 = sadd.s32 %s225, 1
      %p229 = scmp.eq.s32.totalorder %s23, 1
      %p230 = scmp.ne.s32.totalorder %s225, %s227
      %p231 = scmp.eq.s32.totalorder %s23, 0
      %p232 = por %p230, %p231
      %p233 = scmp.ne.s32.totalorder %s225, %s227
      %p234 = scmp.eq.s32.totalorder %s28, 1
      %p235 = por %p233, %p234
      %p236 = scmp.ne.s32.totalorder %s227, %s228
      %p237 = scmp.eq.s32.totalorder %s28, 0
      %p238 = por %p236, %p237
      %p239 = scmp.ne.s32.totalorder %s227, %s228
      %p240 = scmp.eq.s32.totalorder %s29, 1
      %p241 = por %p239, %p240
      %p243 = scmp.ne.s32.totalorder %s228, %s242
      %p244 = scmp.eq.s32.totalorder %s29, 0
      %p245 = por %p243, %p244
      %s246 = ssub.s32 %s23, %s30
      %p247 = scmp.eq.s32.totalorder %s246, 0
      %s249 = sadd.s32 %s248, 1
      %s250 = scalar_select %p247, %s248, %s249
      %p253 = pneg %p247
      %p254 = scmp.eq.s32.totalorder %s23, 1
      %p255 = por %p253, %p254
      %p256 = scmp.ne.s32.totalorder %s248, %s251
      %p257 = scmp.eq.s32.totalorder %s23, 0
      %p258 = por %p256, %p257
      %p259 = scmp.ne.s32.totalorder %s248, %s251
      %p260 = scmp.eq.s32.totalorder %s28, 1
      %p261 = por %p259, %p260
      %p262 = scmp.ne.s32.totalorder %s251, %s252
      %p263 = scmp.eq.s32.totalorder %s28, 0
      %p264 = por %p262, %p263
      %p265 = scmp.ne.s32.totalorder %s251, %s252
      %p266 = scmp.eq.s32.totalorder %s29, 1
      %p267 = por %p265, %p266
      %p269 = scmp.ne.s32.totalorder %s252, %s268
      %p270 = scmp.eq.s32.totalorder %s29, 0
      %p271 = por %p269, %p270
      %p272 = scmp.le.s32.totalorder 1, %s23
      %p273 = scmp.lt.s32.totalorder %s23, 3
      %p274 = pnand %p272, %p273
      %p275 = pneg %p274
      // Predicated region
      $region9: #{tpu_custom_call.1} parent=5 // pred_check
        _
      $region10: #{tpu_custom_call.1} parent=5 // pred_check_branch
        %277 = sbr.rel (%p274) target = $region12
      $region11: #{tpu_custom_call.1} parent=5 // pred_region
        %s278 = ssub.s32 %s23, 1
        // Predicated region
        $region13: #{tpu_custom_call.1} parent=11 // pred_check
          %p279 = pneg %p70
        $region14: #{tpu_custom_call.1} parent=11 // pred_check_branch
          %281 = sbr.rel (%p279) target = $region16
        $region15: #{tpu_custom_call.1} parent=11 // pred_region
          %s283 = ssub.s32 288, 288
          %284 = vsyncadd [#allocation6], %s283
          %s285 = sshll.u32 [#allocation5], 4
          %s286 = int_to_ptr.vmem [resolvable:$true] %s285
          %291 = dma.hbm_to_vmem [thread:$0]  %s1, 288, %s286, [#allocation6], 32, 32, 2
        $region16: #{tpu_custom_call.1} parent=11 // pred_fallthru
          _
        // Predicated region
        $region17: #{tpu_custom_call.1} parent=11 // pred_check
          %p292 = pneg %p91
        $region18: #{tpu_custom_call.1} parent=11 // pred_check_branch
          %294 = sbr.rel (%p292) target = $region20
        $region19: #{tpu_custom_call.1} parent=11 // pred_region
          _
        $region20: #{tpu_custom_call.1} parent=11 // pred_fallthru
          _
        // Predicated region
        $region21: #{tpu_custom_call.1} parent=11 // pred_check
          %p295 = pneg %p112
        $region22: #{tpu_custom_call.1} parent=11 // pred_check_branch
          %297 = sbr.rel (%p295) target = $region24
        $region23: #{tpu_custom_call.1} parent=11 // pred_region
          _
        $region24: #{tpu_custom_call.1} parent=11 // pred_fallthru
          _
        // Predicated region
        $region25: #{tpu_custom_call.1} parent=11 // pred_check
          %p298 = pneg %p133
        $region26: #{tpu_custom_call.1} parent=11 // pred_check_branch
          %300 = sbr.rel (%p298) target = $region28
        $region27: #{tpu_custom_call.1} parent=11 // pred_region
          _
        $region28: #{tpu_custom_call.1} parent=11 // pred_fallthru
          _
        // Predicated region
        $region29: #{tpu_custom_call.1} parent=11 // pred_check
          %p301 = pneg %p154
        $region30: #{tpu_custom_call.1} parent=11 // pred_check_branch
          %303 = sbr.rel (%p301) target = $region32
        $region31: #{tpu_custom_call.1} parent=11 // pred_region
          _
        $region32: #{tpu_custom_call.1} parent=11 // pred_fallthru
          _
        // Predicated region
        $region33: #{tpu_custom_call.1} parent=11 // pred_check
          %p304 = pneg %p175
        $region34: #{tpu_custom_call.1} parent=11 // pred_check_branch
          %306 = sbr.rel (%p304) target = $region36
        $region35: #{tpu_custom_call.1} parent=11 // pred_region
          _
        $region36: #{tpu_custom_call.1} parent=11 // pred_fallthru
          _
        // Predicated region
        $region37: #{tpu_custom_call.1} parent=11 // pred_check
          %p307 = pneg %p196
        $region38: #{tpu_custom_call.1} parent=11 // pred_check_branch
          %309 = sbr.rel (%p307) target = $region40
        $region39: #{tpu_custom_call.1} parent=11 // pred_region
          _
        $region40: #{tpu_custom_call.1} parent=11 // pred_fallthru
          _
        // Predicated region
        $region41: #{tpu_custom_call.1} parent=11 // pred_check
          %p310 = pneg %p217
        $region42: #{tpu_custom_call.1} parent=11 // pred_check_branch
          %312 = sbr.rel (%p310) target = $region44
        $region43: #{tpu_custom_call.1} parent=11 // pred_region
          _
        $region44: #{tpu_custom_call.1} parent=11 // pred_fallthru
          _
        // Predicated region
        $region45: #{tpu_custom_call.1} parent=11 // pred_check
          %p313 = pneg %p238
        $region46: #{tpu_custom_call.1} parent=11 // pred_check_branch
          %315 = sbr.rel (%p313) target = $region48
        $region47: #{tpu_custom_call.1} parent=11 // pred_region
          _
        $region48: #{tpu_custom_call.1} parent=11 // pred_fallthru
          _
      $region12: #{tpu_custom_call.1} parent=5 // pred_fallthru
        _
      %p316 = scmp.lt.s32.totalorder %s23, 2
      // Predicated region
      $region49: #{tpu_custom_call.1} parent=5 // pred_check
        %p317 = pneg %p316
      $region50: #{tpu_custom_call.1} parent=5 // pred_check_branch
        %319 = sbr.rel (%p317) target = $region52
      $region51: #{tpu_custom_call.1} parent=5 // pred_region
        // Predicated region
        $region53: #{tpu_custom_call.1} parent=51 // pred_check
          %p320 = pneg %p43
        $region54: #{tpu_custom_call.1} parent=51 // pred_check_branch
          %322 = sbr.rel (%p320) target = $region56
        $region55: #{tpu_custom_call.1} parent=51 // pred_region
          %s323 = sand.u32 %s33, 1
          %s324 = scalar_lea.sflag [#allocation3], %s323
          %s325 = sand.u32 %s33, 1
          %s326 = smul.addr %s325, 16
          %s327 = scalar_lea.vmem [#allocation2], %s326
          %s329 = ssub.s32 256, 256
          %330 = vsyncadd %s324, %s329
          %s331 = smul.addr %s23, 2
          %s332 = smul.addr %s331, 128
          %s333 = scalar_lea.hbm %s0, %s332
          %s335 = sshll.u32 %s327, 4
          %s336 = int_to_ptr.vmem [resolvable:$true] %s335
          %338 = dma.hbm_to_vmem [thread:$0]  %s333, 256, %s336, %s324
        $region56: #{tpu_custom_call.1} parent=51 // pred_fallthru
          _
      $region52: #{tpu_custom_call.1} parent=5 // pred_fallthru
        _
      %p339 = scmp.le.s32.totalorder 1, %s23
      %p340 = scmp.lt.s32.totalorder %s23, 3
      %p341 = pnand %p339, %p340
      %p342 = pneg %p341
      // Predicated region
      $region57: #{tpu_custom_call.1} parent=5 // pred_check
        _
      $region58: #{tpu_custom_call.1} parent=5 // pred_check_branch
        %344 = sbr.rel (%p341) target = $region60
      $region59: #{tpu_custom_call.1} parent=5 // pred_region
        %s345 = ssub.s32 %s23, 1
        %s346 = sand.u32 %s36, 1
        %s347 = scalar_lea.sflag [#allocation3], %s346
        %s348 = sand.u32 %s36, 1
        %s349 = smul.addr %s348, 16
        %s350 = scalar_lea.vmem [#allocation2], %s349
        // Predicated region
        $region61: #{tpu_custom_call.1} parent=59 // pred_check
          %p351 = pneg %p49
        $region62: #{tpu_custom_call.1} parent=59 // pred_check_branch
          %353 = sbr.rel (%p351) target = $region64
        $region63: #{tpu_custom_call.1} parent=59 // pred_region
          %354 = dma.done %s347, 256
        $region64: #{tpu_custom_call.1} parent=59 // pred_fallthru
          _
        // Predicated region
        $region65: #{tpu_custom_call.1} parent=59 // pred_check
          %p355 = pneg %p70
        $region66: #{tpu_custom_call.1} parent=59 // pred_check_branch
          %357 = sbr.rel (%p355) target = $region68
        $region67: #{tpu_custom_call.1} parent=59 // pred_region
          %358 = dma.done [#allocation6], 288
        $region68: #{tpu_custom_call.1} parent=59 // pred_fallthru
          _
        %s359 = sand.u32 %s36, 1
        %s360 = scalar_lea.sflag [#allocation3], %s359
        %s361 = sand.u32 %s36, 1
        %s362 = smul.addr %s361, 16
        %s363 = scalar_lea.vmem [#allocation2], %s362
        %p364 = pneg %p49
        %p365 = pneg %p46
        %p366 = pneg %p70
        %p367 = pneg %p67
        %p368 = pneg %p91
        %p369 = pneg %p88
        %p370 = pneg %p112
        %p371 = pneg %p109
        %p372 = pneg %p133
        %p373 = pneg %p130
        %p374 = pneg %p154
        %p375 = pneg %p151
        %p376 = pneg %p175
        %p377 = pneg %p172
        %p378 = pneg %p196
        %p379 = pneg %p193
        %p380 = pneg %p217
        %p381 = pneg %p214
        %p382 = pneg %p238
        %p383 = pneg %p235
        %p384 = pneg %p264
        %p385 = pneg %p261
        %s386 = sand.u32 %s251, 1
        %s387 = scalar_lea.sflag [#allocation4], %s386
        %s388 = sand.u32 %s251, 1
        %s389 = smul.addr %s388, 16
        %s390 = scalar_lea.vmem [#allocation7], %s389
        %v392 = vld [vmem:[#allocation5] sm:$0x3]
        %s393 = scalar_lea.vmem [#allocation5], 2
        %v394 = vld [vmem:[%s393] sm:$0x3]
        %s395 = scalar_lea.vmem [#allocation5], 4
        %v396 = vld [vmem:[%s395] sm:$0x3]
        %s397 = scalar_lea.vmem [#allocation5], 6
        %v398 = vld [vmem:[%s397] sm:$0x3]
        %s399 = scalar_lea.vmem [#allocation5], 10
        %v400 = vld [vmem:[%s399] sm:$0x3]
        %s401 = scalar_lea.vmem [#allocation5], 12
        %v402 = vld [vmem:[%s401] sm:$0x3]
        %s403 = scalar_lea.vmem [#allocation5], 14
        %v404 = vld [vmem:[%s403] sm:$0x3]
        %s405 = scalar_lea.vmem [#allocation5], 16
        %v406 = vld [vmem:[%s405] sm:$0x3]
        %v407 = vld [vmem:[%s350] sm:$0xff]
        %v408 = vld [vmem:[%s350 + $0x8] sm:$0xff]
        %409 = vrot.lane.b32.xlu0 %v407, 17
        %v410 = vpop.permute.xlu0 %409
        %411 = vrot.lane.b32.xlu0 %v408, 17
        %v412 = vpop.permute.xlu0 %411
        %v413 = vlaneseq
        %v414 = vand.u32 %v413, 127
        %vm415 = vcmp.lt.s32.totalorder %v414, 17
        %v416 = vsel %vm415, %v410, %v412
        %v417 = vsel %vm415, %v412, %v410
        %v419 = vlaneseq
        %v420 = vshrl.u32 %v419, 7
        %v421 = vsub.s32 0, %v420
        %v422 = vrot.slane %v392, %v421
        %v423 = vlaneseq
        %v424 = vshrl.u32 %v423, 7
        %v425 = vsub.s32 1, %v424
        %v426 = vrot.slane %v392, %v425
        %v429 = vmul.f32 %v417, %v422
        %v430 = vmul.f32 %v416, %v426
        %431 = vrot.lane.b32.xlu0 %v407, 16
        %v432 = vpop.permute.xlu0 %431
        %433 = vrot.lane.b32.xlu0 %v408, 16
        %v434 = vpop.permute.xlu0 %433
        %vm435 = vcmp.lt.s32.totalorder %v414, 16
        %v436 = vsel %vm435, %v432, %v434
        %v437 = vsel %vm435, %v434, %v432
        %v439 = vlaneseq
        %v440 = vshrl.u32 %v439, 7
        %v441 = vsub.s32 0, %v440
        %v442 = vrot.slane %v394, %v441
        %v443 = vlaneseq
        %v444 = vshrl.u32 %v443, 7
        %v445 = vsub.s32 1, %v444
        %v446 = vrot.slane %v394, %v445
        %v449 = vmul.f32 %v437, %v442
        %v450 = vmul.f32 %v436, %v446
        %451 = vrot.lane.b32.xlu0 %v407, 15
        %v452 = vpop.permute.xlu0 %451
        %453 = vrot.lane.b32.xlu0 %v408, 15
        %v454 = vpop.permute.xlu0 %453
        %vm455 = vcmp.lt.s32.totalorder %v414, 15
        %v456 = vsel %vm455, %v452, %v454
        %v457 = vsel %vm455, %v454, %v452
        %v459 = vlaneseq
        %v460 = vshrl.u32 %v459, 7
        %v461 = vsub.s32 0, %v460
        %v462 = vrot.slane %v396, %v461
        %v463 = vlaneseq
        %v464 = vshrl.u32 %v463, 7
        %v465 = vsub.s32 1, %v464
        %v466 = vrot.slane %v396, %v465
        %v469 = vmul.f32 %v457, %v462
        %v470 = vmul.f32 %v456, %v466
        %471 = vrot.lane.b32.xlu0 %v407, 1
        %v472 = vpop.permute.xlu0 %471
        %473 = vrot.lane.b32.xlu0 %v408, 1
        %v474 = vpop.permute.xlu0 %473
        %vm475 = vcmp.lt.s32.totalorder %v414, 1
        %v476 = vsel %vm475, %v472, %v474
        %v477 = vsel %vm475, %v474, %v472
        %v479 = vlaneseq
        %v480 = vshrl.u32 %v479, 7
        %v481 = vsub.s32 0, %v480
        %v482 = vrot.slane %v398, %v481
        %v483 = vlaneseq
        %v484 = vshrl.u32 %v483, 7
        %v485 = vsub.s32 1, %v484
        %v486 = vrot.slane %v398, %v485
        %v489 = vmul.f32 %v477, %v482
        %v490 = vmul.f32 %v476, %v486
        %491 = vrot.lane.b32.xlu0 %v407, 127
        %v492 = vpop.permute.xlu0 %491
        %493 = vrot.lane.b32.xlu0 %v408, 127
        %v494 = vpop.permute.xlu0 %493
        %vm495 = vcmp.lt.s32.totalorder %v414, 127
        %v496 = vsel %vm495, %v492, %v494
        %v497 = vsel %vm495, %v494, %v492
        %v499 = vlaneseq
        %v500 = vshrl.u32 %v499, 7
        %v501 = vsub.s32 0, %v500
        %v502 = vrot.slane %v400, %v501
        %v503 = vlaneseq
        %v504 = vshrl.u32 %v503, 7
        %v505 = vsub.s32 1, %v504
        %v506 = vrot.slane %v400, %v505
        %v509 = vmul.f32 %v496, %v502
        %v510 = vmul.f32 %v497, %v506
        %511 = vrot.lane.b32.xlu0 %v407, 113
        %v512 = vpop.permute.xlu0 %511
        %513 = vrot.lane.b32.xlu0 %v408, 113
        %v514 = vpop.permute.xlu0 %513
        %vm515 = vcmp.lt.s32.totalorder %v414, 113
        %v516 = vsel %vm515, %v512, %v514
        %v517 = vsel %vm515, %v514, %v512
        %v519 = vlaneseq
        %v520 = vshrl.u32 %v519, 7
        %v521 = vsub.s32 0, %v520
        %v522 = vrot.slane %v402, %v521
        %v523 = vlaneseq
        %v524 = vshrl.u32 %v523, 7
        %v525 = vsub.s32 1, %v524
        %v526 = vrot.slane %v402, %v525
        %v529 = vmul.f32 %v516, %v522
        %v530 = vmul.f32 %v517, %v526
        %531 = vrot.lane.b32.xlu0 %v407, 112
        %v532 = vpop.permute.xlu0 %531
        %533 = vrot.lane.b32.xlu0 %v408, 112
        %v534 = vpop.permute.xlu0 %533
        %vm535 = vcmp.lt.s32.totalorder %v414, 112
        %v536 = vsel %vm535, %v532, %v534
        %v537 = vsel %vm535, %v534, %v532
        %v539 = vlaneseq
        %v540 = vshrl.u32 %v539, 7
        %v541 = vsub.s32 0, %v540
        %v542 = vrot.slane %v404, %v541
        %v543 = vlaneseq
        %v544 = vshrl.u32 %v543, 7
        %v545 = vsub.s32 1, %v544
        %v546 = vrot.slane %v404, %v545
        %v549 = vmul.f32 %v536, %v542
        %v550 = vmul.f32 %v537, %v546
        %551 = vrot.lane.b32.xlu0 %v407, 111
        %v552 = vpop.permute.xlu0 %551
        %553 = vrot.lane.b32.xlu0 %v408, 111
        %v554 = vpop.permute.xlu0 %553
        %vm555 = vcmp.lt.s32.totalorder %v414, 111
        %v556 = vsel %vm555, %v552, %v554
        %v557 = vsel %vm555, %v554, %v552
        %v559 = vlaneseq
        %v560 = vshrl.u32 %v559, 7
        %v561 = vsub.s32 0, %v560
        %v562 = vrot.slane %v406, %v561
        %v563 = vlaneseq
        %v564 = vshrl.u32 %v563, 7
        %v565 = vsub.s32 1, %v564
        %v566 = vrot.slane %v406, %v565
        %v569 = vmul.f32 %v556, %v562
        %v570 = vmul.f32 %v557, %v566
        %v571 = vpack.c.bf16 %v449, %v429
        %v572 = vpack.c.bf16 %v450, %v430
        %v573 = vpack.c.bf16 %v489, %v469
        %v574 = vpack.c.bf16 %v490, %v470
        %v575 = vpack.c.bf16 %v509, %v407
        %v576 = vpack.c.bf16 %v510, %v408
        %v577 = vpack.c.bf16 %v549, %v529
        %v578 = vpack.c.bf16 %v550, %v530
        %v579 = vpack.c.bf16 %v569, %v569
        %v580 = vpack.c.bf16 %v570, %v570
        %v581 = vld [vmem:[%s2] sm:$0xf]
        %vm582 = vcmask 588800
        %v584 = vsel %vm582, %v581, 0
        %vm586 = vcmask 1043456
        %v588 = vsel %vm586, %v579, 0
        %v591 = vsel %vm586, %v580, 0
        %593 = vmatprep.subr.bf16.mxu0 %v572
        %594 = vmatpush1.bf16.msra.mxu0 %v571
        %595 = vmatprep.subr.bf16.mxu0 %v574
        %596 = vmatpush1.bf16.msra.mxu0 %v573
        %597 = vmatprep.subr.bf16.mxu0 %v576
        %598 = vmatpush1.bf16.msra.mxu0 %v575
        %599 = vmatprep.subr.bf16.mxu0 %v578
        %600 = vmatpush1.bf16.msra.mxu0 %v577
        %601 = vmatprep.subr.bf16.mxu0 %v591
        %602 = vmatpush1.bf16.msra.mxu0 %v588
        %603 = vmatprep.subr.bf16.mxu0 0
        %604 = vmatpush1.bf16.msra.mxu0 0
        %605 = vmatprep.subr.bf16.mxu0 0
        %606 = vmatpush1.bf16.msra.mxu0 0
        %607 = vmatprep.subr.bf16.mxu0 0
        %608 = vmatpush1.bf16.msra.mxu0 0
        %609 = vmatprep.subr.bf16.mxu0 0
        %610 = vmatpush1.bf16.msra.mxu0 0
        %611 = vmatprep.subr.bf16.mxu0 0
        %612 = vmatpush1.bf16.msra.mxu0 0
        %613 = vmatprep.subr.bf16.mxu0 0
        %614 = vmatpush1.bf16.msra.mxu0 0
        %615 = vmatprep.subr.bf16.mxu0 0
        %616 = vmatpush1.bf16.msra.mxu0 0
        %617 = vmatprep.subr.bf16.mxu0 0
        %618 = vmatpush1.bf16.msra.mxu0 0
        %619 = vmatprep.subr.bf16.mxu0 0
        %620 = vmatpush1.bf16.msra.mxu0 0
        %621 = vmatprep.subr.bf16.mxu0 0
        %622 = vmatpush1.bf16.msra.mxu0 0
        %623 = vmatprep.subr.bf16.mxu0 0
        %624 = vmatpush1.bf16.msra.mxu0 0
        %625 = vmatprep.mubr.bf16.mxu0 0
        %626 = vmatmul.mubr.bf16.gmra.mrb[0].mxu0 %v584
        %v627 = vpop.f32.mrb[0].mxu0
        %v628 = vadd.f32 0.0, %v627
        %v629 = vpop.f32.mrb[0].mxu0
        %v630 = vadd.f32 0.0, %v629
        %v631 = vpop.f32.mrb[0].mxu0
        %v632 = vpop.f32.mrb[0].mxu0
        %633 = vdwg.mxu0
        %v634 = vmax.f32 %v628, 0.0
        %v635 = vmax.f32 %v630, 0.0
        %636 = vrot.lane.b32.xlu0 %v634, 17
        %v637 = vpop.permute.xlu0 %636
        %638 = vrot.lane.b32.xlu0 %v635, 17
        %v639 = vpop.permute.xlu0 %638
        %v640 = vsel %vm415, %v637, %v639
        %v641 = vsel %vm415, %v639, %v637
        %v642 = vmul.f32 %v641, %v422
        %v643 = vmul.f32 %v640, %v426
        %644 = vrot.lane.b32.xlu0 %v634, 16
        %v645 = vpop.permute.xlu0 %644
        %646 = vrot.lane.b32.xlu0 %v635, 16
        %v647 = vpop.permute.xlu0 %646
        %v648 = vsel %vm435, %v645, %v647
        %v649 = vsel %vm435, %v647, %v645
        %v650 = vmul.f32 %v649, %v442
        %v651 = vmul.f32 %v648, %v446
        %652 = vrot.lane.b32.xlu0 %v634, 15
        %v653 = vpop.permute.xlu0 %652
        %654 = vrot.lane.b32.xlu0 %v635, 15
        %v655 = vpop.permute.xlu0 %654
        %v656 = vsel %vm455, %v653, %v655
        %v657 = vsel %vm455, %v655, %v653
        %v658 = vmul.f32 %v657, %v462
        %v659 = vmul.f32 %v656, %v466
        %660 = vrot.lane.b32.xlu0 %v634, 1
        %v661 = vpop.permute.xlu0 %660
        %662 = vrot.lane.b32.xlu0 %v635, 1
        %v663 = vpop.permute.xlu0 %662
        %v664 = vsel %vm475, %v661, %v663
        %v665 = vsel %vm475, %v663, %v661
        %v666 = vmul.f32 %v665, %v482
        %v667 = vmul.f32 %v664, %v486
        %668 = vrot.lane.b32.xlu0 %v634, 127
        %v669 = vpop.permute.xlu0 %668
        %670 = vrot.lane.b32.xlu0 %v635, 127
        %v671 = vpop.permute.xlu0 %670
        %v672 = vsel %vm495, %v669, %v671
        %v673 = vsel %vm495, %v671, %v669
        %v674 = vmul.f32 %v672, %v502
        %v675 = vmul.f32 %v673, %v506
        %676 = vrot.lane.b32.xlu0 %v634, 113
        %v677 = vpop.permute.xlu0 %676
        %678 = vrot.lane.b32.xlu0 %v635, 113
        %v679 = vpop.permute.xlu0 %678
        %v680 = vsel %vm515, %v677, %v679
        %v681 = vsel %vm515, %v679, %v677
        %v682 = vmul.f32 %v680, %v522
        %v683 = vmul.f32 %v681, %v526
        %684 = vrot.lane.b32.xlu0 %v634, 112
        %v685 = vpop.permute.xlu0 %684
        %686 = vrot.lane.b32.xlu0 %v635, 112
        %v687 = vpop.permute.xlu0 %686
        %v688 = vsel %vm535, %v685, %v687
        %v689 = vsel %vm535, %v687, %v685
        %v690 = vmul.f32 %v688, %v542
        %v691 = vmul.f32 %v689, %v546
        %692 = vrot.lane.b32.xlu0 %v634, 111
        %v693 = vpop.permute.xlu0 %692
        %694 = vrot.lane.b32.xlu0 %v635, 111
        %v695 = vpop.permute.xlu0 %694
        %v696 = vsel %vm555, %v693, %v695
        %v697 = vsel %vm555, %v695, %v693
        %v698 = vmul.f32 %v696, %v562
        %v699 = vmul.f32 %v697, %v566
        %v700 = vpack.c.bf16 %v650, %v642
        %v701 = vpack.c.bf16 %v651, %v643
        %v702 = vpack.c.bf16 %v666, %v658
        %v703 = vpack.c.bf16 %v667, %v659
        %v704 = vpack.c.bf16 %v674, %v634
        %v705 = vpack.c.bf16 %v675, %v635
        %v706 = vpack.c.bf16 %v690, %v682
        %v707 = vpack.c.bf16 %v691, %v683
        %v708 = vpack.c.bf16 %v698, %v698
        %v709 = vpack.c.bf16 %v699, %v699
        %v710 = vld [vmem:[%s3] sm:$0xf]
        %v712 = vsel %vm582, %v710, 0
        %v715 = vsel %vm586, %v708, 0
        %v718 = vsel %vm586, %v709, 0
        %720 = vmatprep.subr.bf16.mxu0 %v701
        %721 = vmatpush1.bf16.msra.mxu0 %v700
        %722 = vmatprep.subr.bf16.mxu0 %v703
        %723 = vmatpush1.bf16.msra.mxu0 %v702
        %724 = vmatprep.subr.bf16.mxu0 %v705
        %725 = vmatpush1.bf16.msra.mxu0 %v704
        %726 = vmatprep.subr.bf16.mxu0 %v707
        %727 = vmatpush1.bf16.msra.mxu0 %v706
        %728 = vmatprep.subr.bf16.mxu0 %v718
        %729 = vmatpush1.bf16.msra.mxu0 %v715
        %730 = vmatprep.subr.bf16.mxu0 0
        %731 = vmatpush1.bf16.msra.mxu0 0
        %732 = vmatprep.subr.bf16.mxu0 0
        %733 = vmatpush1.bf16.msra.mxu0 0
        %734 = vmatprep.subr.bf16.mxu0 0
        %735 = vmatpush1.bf16.msra.mxu0 0
        %736 = vmatprep.subr.bf16.mxu0 0
        %737 = vmatpush1.bf16.msra.mxu0 0
        %738 = vmatprep.subr.bf16.mxu0 0
        %739 = vmatpush1.bf16.msra.mxu0 0
        %740 = vmatprep.subr.bf16.mxu0 0
        %741 = vmatpush1.bf16.msra.mxu0 0
        %742 = vmatprep.subr.bf16.mxu0 0
        %743 = vmatpush1.bf16.msra.mxu0 0
        %744 = vmatprep.subr.bf16.mxu0 0
        %745 = vmatpush1.bf16.msra.mxu0 0
        %746 = vmatprep.subr.bf16.mxu0 0
        %747 = vmatpush1.bf16.msra.mxu0 0
        %748 = vmatprep.subr.bf16.mxu0 0
        %749 = vmatpush1.bf16.msra.mxu0 0
        %750 = vmatprep.subr.bf16.mxu0 0
        %751 = vmatpush1.bf16.msra.mxu0 0
        %752 = vmatprep.mubr.bf16.mxu0 0
        %753 = vmatmul.mubr.bf16.gmra.mrb[0].mxu0 %v712
        %v754 = vpop.f32.mrb[0].mxu0
        %v755 = vadd.f32 0.0, %v754
        %v756 = vpop.f32.mrb[0].mxu0
        %v757 = vadd.f32 0.0, %v756
        %v758 = vpop.f32.mrb[0].mxu0
        %v759 = vpop.f32.mrb[0].mxu0
        %760 = vdwg.mxu0
        %v761 = vmax.f32 %v755, 0.0
        %v762 = vmax.f32 %v757, 0.0
        %763 = vrot.lane.b32.xlu0 %v761, 17
        %v764 = vpop.permute.xlu0 %763
        %765 = vrot.lane.b32.xlu0 %v762, 17
        %v766 = vpop.permute.xlu0 %765
        %v767 = vsel %vm415, %v764, %v766
        %v768 = vsel %vm415, %v766, %v764
        %v769 = vmul.f32 %v768, %v422
        %v770 = vmul.f32 %v767, %v426
        %771 = vrot.lane.b32.xlu0 %v761, 16
        %v772 = vpop.permute.xlu0 %771
        %773 = vrot.lane.b32.xlu0 %v762, 16
        %v774 = vpop.permute.xlu0 %773
        %v775 = vsel %vm435, %v772, %v774
        %v776 = vsel %vm435, %v774, %v772
        %v777 = vmul.f32 %v776, %v442
        %v778 = vmul.f32 %v775, %v446
        %779 = vrot.lane.b32.xlu0 %v761, 15
        %v780 = vpop.permute.xlu0 %779
        %781 = vrot.lane.b32.xlu0 %v762, 15
        %v782 = vpop.permute.xlu0 %781
        %v783 = vsel %vm455, %v780, %v782
        %v784 = vsel %vm455, %v782, %v780
        %v785 = vmul.f32 %v784, %v462
        %v786 = vmul.f32 %v783, %v466
        %787 = vrot.lane.b32.xlu0 %v761, 1
        %v788 = vpop.permute.xlu0 %787
        %789 = vrot.lane.b32.xlu0 %v762, 1
        %v790 = vpop.permute.xlu0 %789
        %v791 = vsel %vm475, %v788, %v790
        %v792 = vsel %vm475, %v790, %v788
        %v793 = vmul.f32 %v792, %v482
        %v794 = vmul.f32 %v791, %v486
        %795 = vrot.lane.b32.xlu0 %v761, 127
        %v796 = vpop.permute.xlu0 %795
        %797 = vrot.lane.b32.xlu0 %v762, 127
        %v798 = vpop.permute.xlu0 %797
        %v799 = vsel %vm495, %v796, %v798
        %v800 = vsel %vm495, %v798, %v796
        %v801 = vmul.f32 %v799, %v502
        %v802 = vmul.f32 %v800, %v506
        %803 = vrot.lane.b32.xlu0 %v761, 113
        %v804 = vpop.permute.xlu0 %803
        %805 = vrot.lane.b32.xlu0 %v762, 113
        %v806 = vpop.permute.xlu0 %805
        %v807 = vsel %vm515, %v804, %v806
        %v808 = vsel %vm515, %v806, %v804
        %v809 = vmul.f32 %v807, %v522
        %v810 = vmul.f32 %v808, %v526
        %811 = vrot.lane.b32.xlu0 %v761, 112
        %v812 = vpop.permute.xlu0 %811
        %813 = vrot.lane.b32.xlu0 %v762, 112
        %v814 = vpop.permute.xlu0 %813
        %v815 = vsel %vm535, %v812, %v814
        %v816 = vsel %vm535, %v814, %v812
        %v817 = vmul.f32 %v815, %v542
        %v818 = vmul.f32 %v816, %v546
        %819 = vrot.lane.b32.xlu0 %v761, 111
        %v820 = vpop.permute.xlu0 %819
        %821 = vrot.lane.b32.xlu0 %v762, 111
        %v822 = vpop.permute.xlu0 %821
        %v823 = vsel %vm555, %v820, %v822
        %v824 = vsel %vm555, %v822, %v820
        %v825 = vmul.f32 %v823, %v562
        %v826 = vmul.f32 %v824, %v566
        %v827 = vpack.c.bf16 %v777, %v769
        %v828 = vpack.c.bf16 %v778, %v770
        %v829 = vpack.c.bf16 %v793, %v785
        %v830 = vpack.c.bf16 %v794, %v786
        %v831 = vpack.c.bf16 %v801, %v761
        %v832 = vpack.c.bf16 %v802, %v762
        %v833 = vpack.c.bf16 %v817, %v809
        %v834 = vpack.c.bf16 %v818, %v810
        %v835 = vpack.c.bf16 %v825, %v825
        %v836 = vpack.c.bf16 %v826, %v826
        %v837 = vld [vmem:[%s4] sm:$0xf]
        %v839 = vsel %vm582, %v837, 0
        %v842 = vsel %vm586, %v835, 0
        %v845 = vsel %vm586, %v836, 0
        %847 = vmatprep.subr.bf16.mxu0 %v828
        %848 = vmatpush1.bf16.msra.mxu0 %v827
        %849 = vmatprep.subr.bf16.mxu0 %v830
        %850 = vmatpush1.bf16.msra.mxu0 %v829
        %851 = vmatprep.subr.bf16.mxu0 %v832
        %852 = vmatpush1.bf16.msra.mxu0 %v831
        %853 = vmatprep.subr.bf16.mxu0 %v834
        %854 = vmatpush1.bf16.msra.mxu0 %v833
        %855 = vmatprep.subr.bf16.mxu0 %v845
        %856 = vmatpush1.bf16.msra.mxu0 %v842
        %857 = vmatprep.subr.bf16.mxu0 0
        %858 = vmatpush1.bf16.msra.mxu0 0
        %859 = vmatprep.subr.bf16.mxu0 0
        %860 = vmatpush1.bf16.msra.mxu0 0
        %861 = vmatprep.subr.bf16.mxu0 0
        %862 = vmatpush1.bf16.msra.mxu0 0
        %863 = vmatprep.subr.bf16.mxu0 0
        %864 = vmatpush1.bf16.msra.mxu0 0
        %865 = vmatprep.subr.bf16.mxu0 0
        %866 = vmatpush1.bf16.msra.mxu0 0
        %867 = vmatprep.subr.bf16.mxu0 0
        %868 = vmatpush1.bf16.msra.mxu0 0
        %869 = vmatprep.subr.bf16.mxu0 0
        %870 = vmatpush1.bf16.msra.mxu0 0
        %871 = vmatprep.subr.bf16.mxu0 0
        %872 = vmatpush1.bf16.msra.mxu0 0
        %873 = vmatprep.subr.bf16.mxu0 0
        %874 = vmatpush1.bf16.msra.mxu0 0
        %875 = vmatprep.subr.bf16.mxu0 0
        %876 = vmatpush1.bf16.msra.mxu0 0
        %877 = vmatprep.subr.bf16.mxu0 0
        %878 = vmatpush1.bf16.msra.mxu0 0
        %879 = vmatprep.mubr.bf16.mxu0 0
        %880 = vmatmul.mubr.bf16.gmra.mrb[0].mxu0 %v839
        %v881 = vpop.f32.mrb[0].mxu0
        %v882 = vadd.f32 0.0, %v881
        %v883 = vpop.f32.mrb[0].mxu0
        %v884 = vadd.f32 0.0, %v883
        %v885 = vpop.f32.mrb[0].mxu0
        %v886 = vpop.f32.mrb[0].mxu0
        %887 = vdwg.mxu0
        %v888 = vld [vmem:[%s5] sm:$0xf]
        %v889 = vmax.f32 %v882, 0.0
        %v890 = vmax.f32 %v884, 0.0
        %v891 = vld [vmem:[%s6] sm:$0xf]
        %v892 = vpack.c.bf16 %v889, %v889
        %v893 = vpack.c.bf16 %v890, %v890
        %vm894 = vcmask 64512
        %v896 = vsel %vm894, %v891, 0
        %v899 = vsel %vm586, %v892, 0
        %v902 = vsel %vm586, %v893, 0
        %904 = vmatprep.subr.bf16.mxu0 %v902
        %905 = vmatpush1.bf16.msra.mxu0 %v899
        %906 = vmatprep.subr.bf16.mxu0 0
        %907 = vmatpush1.bf16.msra.mxu0 0
        %908 = vmatprep.subr.bf16.mxu0 0
        %909 = vmatpush1.bf16.msra.mxu0 0
        %910 = vmatprep.subr.bf16.mxu0 0
        %911 = vmatpush1.bf16.msra.mxu0 0
        %912 = vmatprep.subr.bf16.mxu0 0
        %913 = vmatpush1.bf16.msra.mxu0 0
        %914 = vmatprep.subr.bf16.mxu0 0
        %915 = vmatpush1.bf16.msra.mxu0 0
        %916 = vmatprep.subr.bf16.mxu0 0
        %917 = vmatpush1.bf16.msra.mxu0 0
        %918 = vmatprep.subr.bf16.mxu0 0
        %919 = vmatpush1.bf16.msra.mxu0 0
        %920 = vmatprep.subr.bf16.mxu0 0
        %921 = vmatpush1.bf16.msra.mxu0 0
        %922 = vmatprep.subr.bf16.mxu0 0
        %923 = vmatpush1.bf16.msra.mxu0 0
        %924 = vmatprep.subr.bf16.mxu0 0
        %925 = vmatpush1.bf16.msra.mxu0 0
        %926 = vmatprep.subr.bf16.mxu0 0
        %927 = vmatpush1.bf16.msra.mxu0 0
        %928 = vmatprep.subr.bf16.mxu0 0
        %929 = vmatpush1.bf16.msra.mxu0 0
        %930 = vmatprep.subr.bf16.mxu0 0
        %931 = vmatpush1.bf16.msra.mxu0 0
        %932 = vmatprep.subr.bf16.mxu0 0
        %933 = vmatpush1.bf16.msra.mxu0 0
        %934 = vmatprep.subr.bf16.mxu0 0
        %935 = vmatpush1.bf16.msra.mxu0 0
        %936 = vmatprep.mubr.bf16.mxu0 0
        %937 = vmatmul.mubr.bf16.gmra.mrb[0].mxu0 %v896
        %v938 = vpop.f32.mrb[0].mxu0
        %v939 = vadd.f32 0.0, %v938
        %v940 = vpop.f32.mrb[0].mxu0
        %v941 = vadd.f32 0.0, %v940
        %v942 = vpop.f32.mrb[0].mxu0
        %v943 = vpop.f32.mrb[0].mxu0
        %944 = vdwg.mxu0
        %v946 = vsel %vm582, %v888, 0
        %948 = vmatprep.subr.bf16.mxu0 %v828
        %949 = vmatpush1.bf16.msra.mxu0 %v827
        %950 = vmatprep.subr.bf16.mxu0 %v830
        %951 = vmatpush1.bf16.msra.mxu0 %v829
        %952 = vmatprep.subr.bf16.mxu0 %v832
        %953 = vmatpush1.bf16.msra.mxu0 %v831
        %954 = vmatprep.subr.bf16.mxu0 %v834
        %955 = vmatpush1.bf16.msra.mxu0 %v833
        %956 = vmatprep.subr.bf16.mxu0 %v845
        %957 = vmatpush1.bf16.msra.mxu0 %v842
        %958 = vmatprep.subr.bf16.mxu0 0
        %959 = vmatpush1.bf16.msra.mxu0 0
        %960 = vmatprep.subr.bf16.mxu0 0
        %961 = vmatpush1.bf16.msra.mxu0 0
        %962 = vmatprep.subr.bf16.mxu0 0
        %963 = vmatpush1.bf16.msra.mxu0 0
        %964 = vmatprep.subr.bf16.mxu0 0
        %965 = vmatpush1.bf16.msra.mxu0 0
        %966 = vmatprep.subr.bf16.mxu0 0
        %967 = vmatpush1.bf16.msra.mxu0 0
        %968 = vmatprep.subr.bf16.mxu0 0
        %969 = vmatpush1.bf16.msra.mxu0 0
        %970 = vmatprep.subr.bf16.mxu0 0
        %971 = vmatpush1.bf16.msra.mxu0 0
        %972 = vmatprep.subr.bf16.mxu0 0
        %973 = vmatpush1.bf16.msra.mxu0 0
        %974 = vmatprep.subr.bf16.mxu0 0
        %975 = vmatpush1.bf16.msra.mxu0 0
        %976 = vmatprep.subr.bf16.mxu0 0
        %977 = vmatpush1.bf16.msra.mxu0 0
        %978 = vmatprep.subr.bf16.mxu0 0
        %979 = vmatpush1.bf16.msra.mxu0 0
        %980 = vmatprep.mubr.bf16.mxu0 0
        %981 = vmatmul.mubr.bf16.gmra.mrb[0].mxu0 %v946
        %v982 = vpop.f32.mrb[0].mxu0
        %v983 = vadd.f32 %v939, %v982
        %v984 = vpop.f32.mrb[0].mxu0
        %v985 = vadd.f32 %v941, %v984
        %v986 = vpop.f32.mrb[0].mxu0
        %v987 = vpop.f32.mrb[0].mxu0
        %988 = vdwg.mxu0
        %989 = vrot.lane.b32.xlu0 %v889, 17
        %v990 = vpop.permute.xlu0 %989
        %991 = vrot.lane.b32.xlu0 %v890, 17
        %v992 = vpop.permute.xlu0 %991
        %v993 = vsel %vm415, %v990, %v992
        %v994 = vsel %vm415, %v992, %v990
        %v995 = vmul.f32 %v994, %v422
        %v996 = vmul.f32 %v993, %v426
        %997 = vrot.lane.b32.xlu0 %v889, 16
        %v998 = vpop.permute.xlu0 %997
        %999 = vrot.lane.b32.xlu0 %v890, 16
        %v1000 = vpop.permute.xlu0 %999
        %v1001 = vsel %vm435, %v998, %v1000
        %v1002 = vsel %vm435, %v1000, %v998
        %v1003 = vmul.f32 %v1002, %v442
        %v1004 = vmul.f32 %v1001, %v446
        %1005 = vrot.lane.b32.xlu0 %v889, 15
        %v1006 = vpop.permute.xlu0 %1005
        %1007 = vrot.lane.b32.xlu0 %v890, 15
        %v1008 = vpop.permute.xlu0 %1007
        %v1009 = vsel %vm455, %v1006, %v1008
        %v1010 = vsel %vm455, %v1008, %v1006
        %v1011 = vmul.f32 %v1010, %v462
        %v1012 = vmul.f32 %v1009, %v466
        %1013 = vrot.lane.b32.xlu0 %v889, 1
        %v1014 = vpop.permute.xlu0 %1013
        %1015 = vrot.lane.b32.xlu0 %v890, 1
        %v1016 = vpop.permute.xlu0 %1015
        %v1017 = vsel %vm475, %v1014, %v1016
        %v1018 = vsel %vm475, %v1016, %v1014
        %v1019 = vmul.f32 %v1018, %v482
        %v1020 = vmul.f32 %v1017, %v486
        %1021 = vrot.lane.b32.xlu0 %v889, 127
        %v1022 = vpop.permute.xlu0 %1021
        %1023 = vrot.lane.b32.xlu0 %v890, 127
        %v1024 = vpop.permute.xlu0 %1023
        %v1025 = vsel %vm495, %v1022, %v1024
        %v1026 = vsel %vm495, %v1024, %v1022
        %v1027 = vmul.f32 %v1025, %v502
        %v1028 = vmul.f32 %v1026, %v506
        %1029 = vrot.lane.b32.xlu0 %v889, 113
        %v1030 = vpop.permute.xlu0 %1029
        %1031 = vrot.lane.b32.xlu0 %v890, 113
        %v1032 = vpop.permute.xlu0 %1031
        %v1033 = vsel %vm515, %v1030, %v1032
        %v1034 = vsel %vm515, %v1032, %v1030
        %v1035 = vmul.f32 %v1033, %v522
        %v1036 = vmul.f32 %v1034, %v526
        %1037 = vrot.lane.b32.xlu0 %v889, 112
        %v1038 = vpop.permute.xlu0 %1037
        %1039 = vrot.lane.b32.xlu0 %v890, 112
        %v1040 = vpop.permute.xlu0 %1039
        %v1041 = vsel %vm535, %v1038, %v1040
        %v1042 = vsel %vm535, %v1040, %v1038
        %v1043 = vmul.f32 %v1041, %v542
        %v1044 = vmul.f32 %v1042, %v546
        %1045 = vrot.lane.b32.xlu0 %v889, 111
        %v1046 = vpop.permute.xlu0 %1045
        %1047 = vrot.lane.b32.xlu0 %v890, 111
        %v1048 = vpop.permute.xlu0 %1047
        %v1049 = vsel %vm555, %v1046, %v1048
        %v1050 = vsel %vm555, %v1048, %v1046
        %v1051 = vmul.f32 %v1049, %v562
        %v1052 = vmul.f32 %v1050, %v566
        %v1053 = vpack.c.bf16 %v1003, %v995
        %v1054 = vpack.c.bf16 %v1004, %v996
        %v1055 = vpack.c.bf16 %v1019, %v1011
        %v1056 = vpack.c.bf16 %v1020, %v1012
        %v1057 = vpack.c.bf16 %v1027, %v889
        %v1058 = vpack.c.bf16 %v1028, %v890
        %v1059 = vpack.c.bf16 %v1043, %v1035
        %v1060 = vpack.c.bf16 %v1044, %v1036
        %v1061 = vpack.c.bf16 %v1051, %v1051
        %v1062 = vpack.c.bf16 %v1052, %v1052
        %v1063 = vld [vmem:[%s7] sm:$0xf]
        %v1065 = vsel %vm582, %v1063, 0
        %v1068 = vsel %vm586, %v1061, 0
        %v1071 = vsel %vm586, %v1062, 0
        %1073 = vmatprep.subr.bf16.mxu0 %v1054
        %1074 = vmatpush1.bf16.msra.mxu0 %v1053
        %1075 = vmatprep.subr.bf16.mxu0 %v1056
        %1076 = vmatpush1.bf16.msra.mxu0 %v1055
        %1077 = vmatprep.subr.bf16.mxu0 %v1058
        %1078 = vmatpush1.bf16.msra.mxu0 %v1057
        %1079 = vmatprep.subr.bf16.mxu0 %v1060
        %1080 = vmatpush1.bf16.msra.mxu0 %v1059
        %1081 = vmatprep.subr.bf16.mxu0 %v1071
        %1082 = vmatpush1.bf16.msra.mxu0 %v1068
        %1083 = vmatprep.subr.bf16.mxu0 0
        %1084 = vmatpush1.bf16.msra.mxu0 0
        %1085 = vmatprep.subr.bf16.mxu0 0
        %1086 = vmatpush1.bf16.msra.mxu0 0
        %1087 = vmatprep.subr.bf16.mxu0 0
        %1088 = vmatpush1.bf16.msra.mxu0 0
        %1089 = vmatprep.subr.bf16.mxu0 0
        %1090 = vmatpush1.bf16.msra.mxu0 0
        %1091 = vmatprep.subr.bf16.mxu0 0
        %1092 = vmatpush1.bf16.msra.mxu0 0
        %1093 = vmatprep.subr.bf16.mxu0 0
        %1094 = vmatpush1.bf16.msra.mxu0 0
        %1095 = vmatprep.subr.bf16.mxu0 0
        %1096 = vmatpush1.bf16.msra.mxu0 0
        %1097 = vmatprep.subr.bf16.mxu0 0
        %1098 = vmatpush1.bf16.msra.mxu0 0
        %1099 = vmatprep.subr.bf16.mxu0 0
        %1100 = vmatpush1.bf16.msra.mxu0 0
        %1101 = vmatprep.subr.bf16.mxu0 0
        %1102 = vmatpush1.bf16.msra.mxu0 0
        %1103 = vmatprep.subr.bf16.mxu0 0
        %1104 = vmatpush1.bf16.msra.mxu0 0
        %1105 = vmatprep.mubr.bf16.mxu0 0
        %1106 = vmatmul.mubr.bf16.gmra.mrb[0].mxu0 %v1065
        %v1107 = vpop.f32.mrb[0].mxu0
        %v1108 = vadd.f32 0.0, %v1107
        %v1109 = vpop.f32.mrb[0].mxu0
        %v1110 = vadd.f32 0.0, %v1109
        %v1111 = vpop.f32.mrb[0].mxu0
        %v1112 = vpop.f32.mrb[0].mxu0
        %1113 = vdwg.mxu0
        %v1114 = vadd.f32 %v755, %v1108
        %v1115 = vadd.f32 %v757, %v1110
        %v1116 = vld [vmem:[%s8] sm:$0xf]
        %v1117 = vpack.c.bf16 %v761, %v761
        %v1118 = vpack.c.bf16 %v762, %v762
        %v1120 = vsel %vm894, %v1116, 0
        %v1123 = vsel %vm586, %v1117, 0
        %v1126 = vsel %vm586, %v1118, 0
        %1128 = vmatprep.subr.bf16.mxu0 %v1126
        %1129 = vmatpush1.bf16.msra.mxu0 %v1123
        %1130 = vmatprep.subr.bf16.mxu0 0
        %1131 = vmatpush1.bf16.msra.mxu0 0
        %1132 = vmatprep.subr.bf16.mxu0 0
        %1133 = vmatpush1.bf16.msra.mxu0 0
        %1134 = vmatprep.subr.bf16.mxu0 0
        %1135 = vmatpush1.bf16.msra.mxu0 0
        %1136 = vmatprep.subr.bf16.mxu0 0
        %1137 = vmatpush1.bf16.msra.mxu0 0
        %1138 = vmatprep.subr.bf16.mxu0 0
        %1139 = vmatpush1.bf16.msra.mxu0 0
        %1140 = vmatprep.subr.bf16.mxu0 0
        %1141 = vmatpush1.bf16.msra.mxu0 0
        %1142 = vmatprep.subr.bf16.mxu0 0
        %1143 = vmatpush1.bf16.msra.mxu0 0
        %1144 = vmatprep.subr.bf16.mxu0 0
        %1145 = vmatpush1.bf16.msra.mxu0 0
        %1146 = vmatprep.subr.bf16.mxu0 0
        %1147 = vmatpush1.bf16.msra.mxu0 0
        %1148 = vmatprep.subr.bf16.mxu0 0
        %1149 = vmatpush1.bf16.msra.mxu0 0
        %1150 = vmatprep.subr.bf16.mxu0 0
        %1151 = vmatpush1.bf16.msra.mxu0 0
        %1152 = vmatprep.subr.bf16.mxu0 0
        %1153 = vmatpush1.bf16.msra.mxu0 0
        %1154 = vmatprep.subr.bf16.mxu0 0
        %1155 = vmatpush1.bf16.msra.mxu0 0
        %1156 = vmatprep.subr.bf16.mxu0 0
        %1157 = vmatpush1.bf16.msra.mxu0 0
        %1158 = vmatprep.subr.bf16.mxu0 0
        %1159 = vmatpush1.bf16.msra.mxu0 0
        %1160 = vmatprep.mubr.bf16.mxu0 0
        %1161 = vmatmul.mubr.bf16.gmra.mrb[0].mxu0 %v1120
        %v1162 = vpop.f32.mrb[0].mxu0
        %v1163 = vadd.f32 %v882, %v1162
        %v1164 = vpop.f32.mrb[0].mxu0
        %v1165 = vadd.f32 %v884, %v1164
        %v1166 = vpop.f32.mrb[0].mxu0
        %v1167 = vpop.f32.mrb[0].mxu0
        %1168 = vdwg.mxu0
        %v1169 = vmax.f32 %v983, 0.0
        %v1170 = vmax.f32 %v985, 0.0
        %v1171 = vmax.f32 %v1114, 0.0
        %v1172 = vmax.f32 %v1115, 0.0
        %v1173 = vmax.f32 %v1163, 0.0
        %v1174 = vmax.f32 %v1165, 0.0
        %v1175 = vld [vmem:[%s9] sm:$0xf]
        %v1176 = vpack.c.bf16 %v1171, %v1169
        %v1177 = vpack.c.bf16 %v1172, %v1170
        %v1178 = vpack.c.bf16 %v1173, %v1173
        %v1179 = vpack.c.bf16 %v1174, %v1174
        %vm1180 = vcmask 195584
        %v1182 = vsel %vm1180, %v1175, 0
        %v1185 = vsel %vm586, %v1178, 0
        %v1188 = vsel %vm586, %v1179, 0
        %1190 = vmatprep.subr.bf16.mxu0 %v1177
        %1191 = vmatpush1.bf16.msra.mxu0 %v1176
        %1192 = vmatprep.subr.bf16.mxu0 %v1188
        %1193 = vmatpush1.bf16.msra.mxu0 %v1185
        %1194 = vmatprep.subr.bf16.mxu0 0
        %1195 = vmatpush1.bf16.msra.mxu0 0
        %1196 = vmatprep.subr.bf16.mxu0 0
        %1197 = vmatpush1.bf16.msra.mxu0 0
        %1198 = vmatprep.subr.bf16.mxu0 0
        %1199 = vmatpush1.bf16.msra.mxu0 0
        %1200 = vmatprep.subr.bf16.mxu0 0
        %1201 = vmatpush1.bf16.msra.mxu0 0
        %1202 = vmatprep.subr.bf16.mxu0 0
        %1203 = vmatpush1.bf16.msra.mxu0 0
        %1204 = vmatprep.subr.bf16.mxu0 0
        %1205 = vmatpush1.bf16.msra.mxu0 0
        %1206 = vmatprep.subr.bf16.mxu0 0
        %1207 = vmatpush1.bf16.msra.mxu0 0
        %1208 = vmatprep.subr.bf16.mxu0 0
        %1209 = vmatpush1.bf16.msra.mxu0 0
        %1210 = vmatprep.subr.bf16.mxu0 0
        %1211 = vmatpush1.bf16.msra.mxu0 0
        %1212 = vmatprep.subr.bf16.mxu0 0
        %1213 = vmatpush1.bf16.msra.mxu0 0
        %1214 = vmatprep.subr.bf16.mxu0 0
        %1215 = vmatpush1.bf16.msra.mxu0 0
        %1216 = vmatprep.subr.bf16.mxu0 0
        %1217 = vmatpush1.bf16.msra.mxu0 0
        %1218 = vmatprep.subr.bf16.mxu0 0
        %1219 = vmatpush1.bf16.msra.mxu0 0
        %1220 = vmatprep.subr.bf16.mxu0 0
        %1221 = vmatpush1.bf16.msra.mxu0 0
        %1222 = vmatprep.mubr.bf16.mxu0 0
        %1223 = vmatmul.mubr.bf16.gmra.mrb[0].mxu0 %v1182
        %v1224 = vpop.f32.mrb[0].mxu0
        %v1225 = vadd.f32 0.0, %v1224
        %v1226 = vpop.f32.mrb[0].mxu0
        %v1227 = vadd.f32 0.0, %v1226
        %v1228 = vpop.f32.mrb[0].mxu0
        %v1229 = vpop.f32.mrb[0].mxu0
        %1230 = vdwg.mxu0
        %1231 = vst [vmem:[%s390] sm:$0xff] %v1225
        %1232 = vst [vmem:[%s390 + $0x8] sm:$0xff] %v1227
        %s1233 = sand.u32 %s251, 1
        %s1234 = scalar_lea.sflag [#allocation4], %s1233
        %s1235 = sand.u32 %s251, 1
        %s1236 = smul.addr %s1235, 16
        %s1237 = scalar_lea.vmem [#allocation7], %s1236
        // Predicated region
        $region69: #{tpu_custom_call.1} parent=59 // pred_check
          %p1238 = pneg %p261
        $region70: #{tpu_custom_call.1} parent=59 // pred_check_branch
          %1240 = sbr.rel (%p1238) target = $region72
        $region71: #{tpu_custom_call.1} parent=59 // pred_region
          %s1242 = ssub.s32 256, 256
          %1243 = vsyncadd %s1234, %s1242
          %s1244 = smul.addr %s28, 2
          %s1245 = smul.addr %s1244, 128
          %s1246 = scalar_lea.hbm %s10, %s1245
          %s1248 = sshll.u32 %s1237, 4
          %s1249 = int_to_ptr.vmem [resolvable:$true] %s1248
          %1251 = dma.vmem_to_hbm [thread:$0]  %s1249, 256, %s1246, %s1234
        $region72: #{tpu_custom_call.1} parent=59 // pred_fallthru
          _
      $region60: #{tpu_custom_call.1} parent=5 // pred_fallthru
        _
      %p1252 = scmp.le.s32.totalorder 2, %s23
      // Predicated region
      $region73: #{tpu_custom_call.1} parent=5 // pred_check
        %p1253 = pneg %p1252
      $region74: #{tpu_custom_call.1} parent=5 // pred_check_branch
        %1255 = sbr.rel (%p1253) target = $region76
      $region75: #{tpu_custom_call.1} parent=5 // pred_region
        %s1256 = ssub.s32 %s23, 2
        // Predicated region
        $region77: #{tpu_custom_call.1} parent=75 // pred_check
          %p1257 = pneg %p267
        $region78: #{tpu_custom_call.1} parent=75 // pred_check_branch
          %1259 = sbr.rel (%p1257) target = $region80
        $region79: #{tpu_custom_call.1} parent=75 // pred_region
          %s1260 = sand.u32 %s252, 1
          %s1261 = scalar_lea.sflag [#allocation4], %s1260
          %s1262 = sand.u32 %s252, 1
          %s1263 = smul.addr %s1262, 16
          %s1264 = scalar_lea.vmem [#allocation7], %s1263
          %1265 = dma.done %s1261, 256
        $region80: #{tpu_custom_call.1} parent=75 // pred_fallthru
          _
      $region76: #{tpu_custom_call.1} parent=5 // pred_fallthru
        _
    $region6: #{tpu_custom_call.1} parent=1 // loop_footer
      %s27 = sadd.s32 1, %s23
    $region7: #{tpu_custom_call.1} parent=1 // loop_footer_branch
      %22 = sbr.rel target = $region3
    $region8: #{tpu_custom_call.1} parent=1 // loop_exit
      _
    %1266 = vsyncpa [#allocation3], 1
    %s1267 = scalar_lea.sflag [#allocation3], 1
    %1268 = vsyncpa %s1267, 1
    %1269 = vsyncpa [#allocation6], 1
    %1270 = vsyncpa [#allocation4], 1
    %s1271 = scalar_lea.sflag [#allocation4], 1
    %1272 = vsyncpa %s1271, 1

</llo_original>
